<compile_context>
chip_gen: v6e
topology: v6e:2x2x1
jax: 0.10.0
libtpu: 0.0.40
codegen_flags: <defaults>
</compile_context>

<pallas_src>
import jax
import jax.numpy as jnp
from jax.experimental import pallas as pl
from jax.experimental.pallas import tpu as pltpu

LN_EPS = 1e-5


# --------------------------------------------------------------------------------------
# Kernel
# --------------------------------------------------------------------------------------
def _make_kernel(n_head):
    H = n_head

    def kernel(xq_ref, xf_ref,
               ln1_w, ln1_b,
               wq, bq, wk, bk, wv, bv, wo, bo,
               ln12_w, ln12_b,
               ln2_w, ln2_b, wfc, bfc, wproj, bproj,
               ln22_w, ln22_b,
               o_ref):
        f32 = jnp.float32
        bf16 = jnp.bfloat16

        xq = xq_ref[0].astype(f32)            # (TQ, D) query / residual tile
        xf = xf_ref[0].astype(f32)            # (S,  D) full sequence (keys / values)
        TQ, D = xq.shape
        S = xf.shape[0]

        def layer_norm(v, w_ref, b_ref):
            # fp32 LayerNorm (matches the LayerNorm subclass that upcasts to fp32).
            mu = jnp.mean(v, axis=-1, keepdims=True)
            var = jnp.mean(jnp.square(v - mu), axis=-1, keepdims=True)
            return (v - mu) * jax.lax.rsqrt(var + LN_EPS) * w_ref[0] + b_ref[0]

        # -------------- attention branch: xq + ln_12( MHA(ln_1(x)) ) --------------
        xnq = layer_norm(xq, ln1_w, ln1_b).astype(bf16)
        xnf = layer_norm(xf, ln1_w, ln1_b).astype(bf16)

        # Head-batched projections; heads are the leading batch dim everywhere.
        xnq_b = jnp.broadcast_to(xnq[None], (H, TQ, D))
        xnf_b = jnp.broadcast_to(xnf[None], (H, S, D))
        q = jnp.einsum("hsd,hdf->hsf", xnq_b, wq[...],
                       preferred_element_type=f32) + bq[...]      # (H, TQ, hd), scale folded
        k = jnp.einsum("hsd,hdf->hsf", xnf_b, wk[...],
                       preferred_element_type=f32) + bk[...]      # (H, S, hd)
        v = jnp.einsum("hsd,hdf->hsf", xnf_b, wv[...],
                       preferred_element_type=f32) + bv[...]      # (H, S, hd)

        # Scores / softmax / context, batched over heads (no transposes, no concat).
        s = jnp.einsum("hqf,hkf->hqk", q.astype(bf16), k.astype(bf16),
                       preferred_element_type=f32)                # (H, TQ, S)
        s = s - jnp.max(s, axis=-1, keepdims=True)
        p = jnp.exp(s)
        p = p * pl.reciprocal(jnp.sum(p, axis=-1, keepdims=True), approx=True)
        ctx = jnp.einsum("hqk,hkf->hqf", p.astype(bf16), v.astype(bf16),
                         preferred_element_type=f32)              # (H, TQ, hd)

        # Per-head output projection then head-sum (avoids a (H,TQ,hd)->(TQ,H*hd)
        # relayout / concat).
        attn = jnp.sum(
            jnp.einsum("hqf,hfd->hqd", ctx.astype(bf16), wo[...],
                       preferred_element_type=f32),
            axis=0) + bo[0]                                       # (TQ, D)

        x = xq + layer_norm(attn, ln12_w, ln12_b)

        # -------------- mlp branch: x + ln_22( c_proj(relu(c_fc(ln_2(x)))) ) --------
        xn2 = layer_norm(x, ln2_w, ln2_b).astype(bf16)
        hmid = jnp.dot(xn2, wfc[...], preferred_element_type=f32) + bfc[0]
        hmid = jnp.maximum(hmid, 0.0).astype(bf16)
        mlp = jnp.dot(hmid, wproj[...], preferred_element_type=f32) + bproj[0]
        x = x + layer_norm(mlp, ln22_w, ln22_b)

        o_ref[0] = x.astype(o_ref.dtype)

    return kernel


_KWEIGHT_ORDER = ("ln1_w", "ln1_b",
                  "wq_h", "bq_h", "wk_h", "bk_h", "wv_h", "bv_h", "wo_h", "bo",
                  "ln12_w", "ln12_b",
                  "ln2_w", "ln2_b", "wfc", "bfc", "wproj", "bproj",
                  "ln22_w", "ln22_b")


# --------------------------------------------------------------------------------------
# Wrapper
# --------------------------------------------------------------------------------------
def residual_attention_block(x, kparams, n_head, *, tq=None):
    """x: (B, S, D) float32.  kparams: dict from prepare_params()."""
    B, S, D = x.shape

    if tq is None:
        tq = min(S, 128)
    if S % tq != 0:
        tq = S                      # fall back to a single query tile
    nq = S // tq

    weights = [kparams[name] for name in _KWEIGHT_ORDER]

    def wspec(a):
        nd = a.ndim
        return pl.BlockSpec(a.shape, lambda b, i, _nd=nd: (0,) * _nd)

    in_specs = [
        pl.BlockSpec((1, tq, D), lambda b, i: (b, i, 0)),   # query / residual tile
        pl.BlockSpec((1, S, D), lambda b, i: (b, 0, 0)),    # full sequence for K/V
    ] + [wspec(w) for w in weights]
    out_spec = pl.BlockSpec((1, tq, D), lambda b, i: (b, i, 0))

    # Advisory cost estimate (helps XLA schedule around the custom call).
    flops = B * (2 * S * D * 3 * D            # qkv projection
                 + 2 * S * S * D              # scores
                 + 2 * S * S * D              # probs @ v
                 + 2 * S * D * D              # output projection
                 + 2 * S * D * 4 * D          # c_fc
                 + 2 * S * 4 * D * D)         # c_proj
    transcendentals = B * (n_head * S * S + 4 * S)
    bytes_accessed = 3 * x.size * x.dtype.itemsize \
        + sum(int(w.size) * w.dtype.itemsize for w in weights)

    fn = pl.pallas_call(
        _make_kernel(n_head),
        out_shape=jax.ShapeDtypeStruct((B, S, D), x.dtype),
        grid_spec=pltpu.PrefetchScalarGridSpec(
            num_scalar_prefetch=0,
            grid=(B, nq),
            in_specs=in_specs,
            out_specs=out_spec,
        ),
        compiler_params=pltpu.CompilerParams(
            dimension_semantics=("parallel", "parallel"),
            vmem_limit_bytes=48 * 1024 * 1024,     # raised limit, headroom under v7x 64 MiB
        ),
        cost_estimate=pl.CostEstimate(flops=flops,
                                      transcendentals=transcendentals,
                                      bytes_accessed=bytes_accessed),
    )
    return fn(x, x, *weights)


# --------------------------------------------------------------------------------------
# Parameters
# --------------------------------------------------------------------------------------
def init_params(key, d_model, n_head):
    """Deterministic synthetic parameters with the nn.Module's logical shapes.
    Linear/attention weights are stored pre-transposed so the math is x @ W."""
    ks = jax.random.split(key, 10)
    D = d_model

    def rnd(k, shape, scale=0.02):
        return (scale * jax.random.normal(k, shape)).astype(jnp.float32)

    return {
        "ln1_w": jnp.ones((1, D), jnp.float32),
        "ln1_b": jnp.zeros((1, D), jnp.float32),
        "ln12_w": jnp.ones((1, D), jnp.float32) + rnd(ks[0], (1, D)),
        "ln12_b": rnd(ks[1], (1, D)),
        "ln2_w": jnp.ones((1, D), jnp.float32),
        "ln2_b": jnp.zeros((1, D), jnp.float32),
        "ln22_w": jnp.ones((1, D), jnp.float32) + rnd(ks[2], (1, D)),
        "ln22_b": rnd(ks[3], (1, D)),
        # MultiheadAttention in_proj (3D, D) stored transposed -> (D, 3D)
        "wqkv": rnd(ks[4], (D, 3 * D), scale=0.1),
        "bqkv": rnd(ks[5], (1, 3 * D), scale=0.02),
        # out_proj (D, D) stored transposed -> (D, D)
        "wo": rnd(ks[6], (D, D), scale=0.1),
        "bo": rnd(ks[7], (1, D), scale=0.02),
        # mlp c_fc -> (D, 4D), c_proj -> (4D, D)
        "wfc": rnd(ks[8], (D, 4 * D), scale=0.1),
        "bfc": jnp.zeros((1, 4 * D), jnp.float32),
        "wproj": rnd(ks[9], (4 * D, D), scale=0.1),
        "bproj": jnp.zeros((1, D), jnp.float32),
    }


def prepare_params(params, n_head):
    """Rearrange module parameters into the kernel's head-major, bf16 layout.
    Folds the 1/sqrt(head_dim) attention scale into the q projection."""
    D = params["wqkv"].shape[0]
    H = n_head
    hd = D // H
    scale = 1.0 / (hd ** 0.5)
    bf16 = jnp.bfloat16
    f32 = jnp.float32

    wqkv, bqkv = params["wqkv"], params["bqkv"][0]
    wq, wk, wv = wqkv[:, :D], wqkv[:, D:2 * D], wqkv[:, 2 * D:]
    bq, bk, bv = bqkv[:D], bqkv[D:2 * D], bqkv[2 * D:]

    def w_heads(w):       # (D, D) -> (H, D, hd)
        return jnp.transpose(w.reshape(D, H, hd), (1, 0, 2))

    def b_heads(b):       # (D,) -> (H, 1, hd)
        return b.reshape(H, hd)[:, None, :]

    kp = dict(params)
    kp.update({
        "wq_h": (w_heads(wq) * scale).astype(bf16),
        "bq_h": (b_heads(bq) * scale).astype(f32),
        "wk_h": w_heads(wk).astype(bf16),
        "bk_h": b_heads(bk).astype(f32),
        "wv_h": w_heads(wv).astype(bf16),
        "bv_h": b_heads(bv).astype(f32),
        "wo_h": params["wo"].reshape(H, hd, D).astype(bf16),
        "wfc": params["wfc"].astype(bf16),
        "wproj": params["wproj"].astype(bf16),
    })
    return kp


# --------------------------------------------------------------------------------------
# Pure-JAX fp32 reference (mirrors the PyTorch module in eval mode)
# --------------------------------------------------------------------------------------
def _reference(x, p, n_head):
    def ln(v, w, b):
        mu = jnp.mean(v, axis=-1, keepdims=True)
        var = jnp.mean((v - mu) ** 2, axis=-1, keepdims=True)
        return (v - mu) / jnp.sqrt(var + LN_EPS) * w[0] + b[0]

    B, S, D = x.shape
    hd = D // n_head
    xn = ln(x, p["ln1_w"], p["ln1_b"])
    qkv = xn @ p["wqkv"] + p["bqkv"][0]
    q, k, v = qkv[..., :D], qkv[..., D:2 * D], qkv[..., 2 * D:]
    q = q.reshape(B, S, n_head, hd).transpose(0, 2, 1, 3) / jnp.sqrt(hd)
    k = k.reshape(B, S, n_head, hd).transpose(0, 2, 1, 3)
    v = v.reshape(B, S, n_head, hd).transpose(0, 2, 1, 3)
    s = jnp.einsum("bhqd,bhkd->bhqk", q, k)
    pmat = jax.nn.softmax(s, axis=-1)
    o = jnp.einsum("bhqk,bhkd->bhqd", pmat, v).transpose(0, 2, 1, 3).reshape(B, S, D)
    o = o @ p["wo"] + p["bo"][0]
    x = x + ln(o, p["ln12_w"], p["ln12_b"])
    xn2 = ln(x, p["ln2_w"], p["ln2_b"])
    h = jax.nn.relu(xn2 @ p["wfc"] + p["bfc"][0])
    m = h @ p["wproj"] + p["bproj"][0]
    return x + ln(m, p["ln22_w"], p["ln22_b"])


def _check(x, n_head, tq=None):
    key = jax.random.PRNGKey(0)
    params = init_params(jax.random.fold_in(key, x.shape[-1]), x.shape[-1], n_head)
    kparams = prepare_params(params, n_head)

    out = residual_attention_block(x, kparams, n_head, tq=tq)
    out = jax.block_until_ready(out)
    ref = _reference(x, params, n_head)

    assert out.shape == x.shape
    assert not bool(jnp.any(jnp.isnan(out)))
    err = out - ref
    rel_rms = float(jnp.sqrt(jnp.mean(err * err) / jnp.mean(ref * ref)))
    max_abs = float(jnp.max(jnp.abs(err)))
    # bf16 matmul operands + approx softmax reciprocal vs. a pure-fp32 reference,
    # with LayerNorms amplifying small absolute errors -> loose-but-meaningful bound.
    assert rel_rms < 2e-2 and max_abs < 2.5e-1, (
        f"mismatch vs reference: rel_rms={rel_rms:.4g} max_abs={max_abs:.4g}")


if __name__ == "__main__":
    key = jax.random.PRNGKey(0)
    k1, k2 = jax.random.split(key)

    # Small demo shape: batch=2, seq=8, d_model=32, heads=4 (head_dim=8); single q-tile.
    x_small = jax.random.normal(k1, (2, 8, 32), dtype=jnp.float32)
    _check(x_small, n_head=4)

    # Lane-aligned shape exercising the multi-query-tile grid path (2 tiles of 8).
    x_tiled = jax.random.normal(k2, (2, 16, 128), dtype=jnp.float32)
    _check(x_tiled, n_head=4, tq=8)

    print("KERNEL_OK")
</pallas_src>

<mosaic_0001>
module attributes {stable_mosaic.version = 11 : i64} {
  func.func @kernel(%arg0: i32, %arg1: i32, %arg2: memref<1x8x32xf32, #tpu.memory_space<vmem>>, %arg3: memref<1x8x32xf32, #tpu.memory_space<vmem>>, %arg4: memref<1x32xf32, #tpu.memory_space<vmem>>, %arg5: memref<1x32xf32, #tpu.memory_space<vmem>>, %arg6: memref<4x32x8xbf16, #tpu.memory_space<vmem>>, %arg7: memref<4x1x8xf32, #tpu.memory_space<vmem>>, %arg8: memref<4x32x8xbf16, #tpu.memory_space<vmem>>, %arg9: memref<4x1x8xf32, #tpu.memory_space<vmem>>, %arg10: memref<4x32x8xbf16, #tpu.memory_space<vmem>>, %arg11: memref<4x1x8xf32, #tpu.memory_space<vmem>>, %arg12: memref<4x8x32xbf16, #tpu.memory_space<vmem>>, %arg13: memref<1x32xf32, #tpu.memory_space<vmem>>, %arg14: memref<1x32xf32, #tpu.memory_space<vmem>>, %arg15: memref<1x32xf32, #tpu.memory_space<vmem>>, %arg16: memref<1x32xf32, #tpu.memory_space<vmem>>, %arg17: memref<1x32xf32, #tpu.memory_space<vmem>>, %arg18: memref<32x128xbf16, #tpu.memory_space<vmem>>, %arg19: memref<1x128xf32, #tpu.memory_space<vmem>>, %arg20: memref<128x32xbf16, #tpu.memory_space<vmem>>, %arg21: memref<1x32xf32, #tpu.memory_space<vmem>>, %arg22: memref<1x32xf32, #tpu.memory_space<vmem>>, %arg23: memref<1x32xf32, #tpu.memory_space<vmem>>, %arg24: memref<1x8x32xf32, #tpu.memory_space<vmem>>) attributes {dimension_semantics = [#tpu.dimension_semantics<parallel>, #tpu.dimension_semantics<parallel>], iteration_bounds = array<i64: 2, 1>, scalar_prefetch = 0 : i64, scratch_operands = 0 : i64, tpu.core_type = #tpu.core_type<tc>, window_params = [{transform_indices = @transform_0, window_bounds = array<i64: 1, 8, 32>}, {transform_indices = @transform_1, window_bounds = array<i64: 1, 8, 32>}, {pipeline_mode = #tpu.pipeline_mode<synchronous>, transform_indices = @transform_2, window_bounds = array<i64: 1, 32>}, {pipeline_mode = #tpu.pipeline_mode<synchronous>, transform_indices = @transform_3, window_bounds = array<i64: 1, 32>}, {pipeline_mode = #tpu.pipeline_mode<synchronous>, transform_indices = @transform_4, window_bounds = array<i64: 4, 32, 8>}, {pipeline_mode = #tpu.pipeline_mode<synchronous>, transform_indices = @transform_5, window_bounds = array<i64: 4, 1, 8>}, {pipeline_mode = #tpu.pipeline_mode<synchronous>, transform_indices = @transform_6, window_bounds = array<i64: 4, 32, 8>}, {pipeline_mode = #tpu.pipeline_mode<synchronous>, transform_indices = @transform_7, window_bounds = array<i64: 4, 1, 8>}, {pipeline_mode = #tpu.pipeline_mode<synchronous>, transform_indices = @transform_8, window_bounds = array<i64: 4, 32, 8>}, {pipeline_mode = #tpu.pipeline_mode<synchronous>, transform_indices = @transform_9, window_bounds = array<i64: 4, 1, 8>}, {pipeline_mode = #tpu.pipeline_mode<synchronous>, transform_indices = @transform_10, window_bounds = array<i64: 4, 8, 32>}, {pipeline_mode = #tpu.pipeline_mode<synchronous>, transform_indices = @transform_11, window_bounds = array<i64: 1, 32>}, {pipeline_mode = #tpu.pipeline_mode<synchronous>, transform_indices = @transform_12, window_bounds = array<i64: 1, 32>}, {pipeline_mode = #tpu.pipeline_mode<synchronous>, transform_indices = @transform_13, window_bounds = array<i64: 1, 32>}, {pipeline_mode = #tpu.pipeline_mode<synchronous>, transform_indices = @transform_14, window_bounds = array<i64: 1, 32>}, {pipeline_mode = #tpu.pipeline_mode<synchronous>, transform_indices = @transform_15, window_bounds = array<i64: 1, 32>}, {pipeline_mode = #tpu.pipeline_mode<synchronous>, transform_indices = @transform_16, window_bounds = array<i64: 32, 128>}, {pipeline_mode = #tpu.pipeline_mode<synchronous>, transform_indices = @transform_17, window_bounds = array<i64: 1, 128>}, {pipeline_mode = #tpu.pipeline_mode<synchronous>, transform_indices = @transform_18, window_bounds = array<i64: 128, 32>}, {pipeline_mode = #tpu.pipeline_mode<synchronous>, transform_indices = @transform_19, window_bounds = array<i64: 1, 32>}, {pipeline_mode = #tpu.pipeline_mode<synchronous>, transform_indices = @transform_20, window_bounds = array<i64: 1, 32>}, {pipeline_mode = #tpu.pipeline_mode<synchronous>, transform_indices = @transform_21, window_bounds = array<i64: 1, 32>}, {transform_indices = @transform_22, window_bounds = array<i64: 1, 8, 32>}]} {
    %c0 = arith.constant 0 : index
    %c0_0 = arith.constant 0 : index
    %c0_1 = arith.constant 0 : index
    %0 = vector.load %arg2[%c0, %c0_0, %c0_1] : memref<1x8x32xf32, #tpu.memory_space<vmem>>, vector<1x8x32xf32>
    %1 = vector.shape_cast %0 : vector<1x8x32xf32> to vector<8x32xf32>
    %c0_2 = arith.constant 0 : index
    %c0_3 = arith.constant 0 : index
    %c0_4 = arith.constant 0 : index
    %2 = vector.load %arg3[%c0_2, %c0_3, %c0_4] : memref<1x8x32xf32, #tpu.memory_space<vmem>>, vector<1x8x32xf32>
    %3 = vector.shape_cast %2 : vector<1x8x32xf32> to vector<8x32xf32>
    %cst = arith.constant dense<0.000000e+00> : vector<8xf32>
    %4 = vector.multi_reduction <add>, %1, %cst [1] : vector<8x32xf32> to vector<8xf32>
    %5 = vector.shape_cast %4 : vector<8xf32> to vector<8x1xf32>
    %cst_5 = arith.constant 3.200000e+01 : f32
    %6 = vector.broadcast %cst_5 : f32 to vector<8x1xf32>
    %7 = arith.divf %5, %6 : vector<8x1xf32>
    %8 = vector.broadcast %7 : vector<8x1xf32> to vector<8x32xf32>
    %9 = arith.subf %1, %8 : vector<8x32xf32>
    %10 = arith.mulf %9, %9 : vector<8x32xf32>
    %cst_6 = arith.constant dense<0.000000e+00> : vector<8xf32>
    %11 = vector.multi_reduction <add>, %10, %cst_6 [1] : vector<8x32xf32> to vector<8xf32>
    %12 = vector.shape_cast %11 : vector<8xf32> to vector<8x1xf32>
    %cst_7 = arith.constant 3.200000e+01 : f32
    %13 = vector.broadcast %cst_7 : f32 to vector<8x1xf32>
    %14 = arith.divf %12, %13 : vector<8x1xf32>
    %15 = vector.broadcast %7 : vector<8x1xf32> to vector<8x32xf32>
    %16 = arith.subf %1, %15 : vector<8x32xf32>
    %cst_8 = arith.constant 9.99999974E-6 : f32
    %17 = vector.broadcast %cst_8 : f32 to vector<8x1xf32>
    %18 = arith.addf %14, %17 : vector<8x1xf32>
    %19 = math.rsqrt %18 : vector<8x1xf32>
    %20 = vector.broadcast %19 : vector<8x1xf32> to vector<8x32xf32>
    %21 = arith.mulf %16, %20 : vector<8x32xf32>
    %c0_9 = arith.constant 0 : index
    %c0_10 = arith.constant 0 : index
    %22 = vector.load %arg4[%c0_9, %c0_10] : memref<1x32xf32, #tpu.memory_space<vmem>>, vector<1x32xf32>
    %23 = vector.shape_cast %22 : vector<1x32xf32> to vector<32xf32>
    %24 = vector.shape_cast %23 : vector<32xf32> to vector<1x32xf32>
    %25 = vector.broadcast %24 : vector<1x32xf32> to vector<8x32xf32>
    %26 = arith.mulf %21, %25 : vector<8x32xf32>
    %c0_11 = arith.constant 0 : index
    %c0_12 = arith.constant 0 : index
    %27 = vector.load %arg5[%c0_11, %c0_12] : memref<1x32xf32, #tpu.memory_space<vmem>>, vector<1x32xf32>
    %28 = vector.shape_cast %27 : vector<1x32xf32> to vector<32xf32>
    %29 = vector.shape_cast %28 : vector<32xf32> to vector<1x32xf32>
    %30 = vector.broadcast %29 : vector<1x32xf32> to vector<8x32xf32>
    %31 = arith.addf %26, %30 : vector<8x32xf32>
    %32 = arith.truncf %31 : vector<8x32xf32> to vector<8x32xbf16>
    %cst_13 = arith.constant dense<0.000000e+00> : vector<8xf32>
    %33 = vector.multi_reduction <add>, %3, %cst_13 [1] : vector<8x32xf32> to vector<8xf32>
    %34 = vector.shape_cast %33 : vector<8xf32> to vector<8x1xf32>
    %cst_14 = arith.constant 3.200000e+01 : f32
    %35 = vector.broadcast %cst_14 : f32 to vector<8x1xf32>
    %36 = arith.divf %34, %35 : vector<8x1xf32>
    %37 = vector.broadcast %36 : vector<8x1xf32> to vector<8x32xf32>
    %38 = arith.subf %3, %37 : vector<8x32xf32>
    %39 = arith.mulf %38, %38 : vector<8x32xf32>
    %cst_15 = arith.constant dense<0.000000e+00> : vector<8xf32>
    %40 = vector.multi_reduction <add>, %39, %cst_15 [1] : vector<8x32xf32> to vector<8xf32>
    %41 = vector.shape_cast %40 : vector<8xf32> to vector<8x1xf32>
    %cst_16 = arith.constant 3.200000e+01 : f32
    %42 = vector.broadcast %cst_16 : f32 to vector<8x1xf32>
    %43 = arith.divf %41, %42 : vector<8x1xf32>
    %44 = vector.broadcast %36 : vector<8x1xf32> to vector<8x32xf32>
    %45 = arith.subf %3, %44 : vector<8x32xf32>
    %cst_17 = arith.constant 9.99999974E-6 : f32
    %46 = vector.broadcast %cst_17 : f32 to vector<8x1xf32>
    %47 = arith.addf %43, %46 : vector<8x1xf32>
    %48 = math.rsqrt %47 : vector<8x1xf32>
    %49 = vector.broadcast %48 : vector<8x1xf32> to vector<8x32xf32>
    %50 = arith.mulf %45, %49 : vector<8x32xf32>
    %c0_18 = arith.constant 0 : index
    %c0_19 = arith.constant 0 : index
    %51 = vector.load %arg4[%c0_18, %c0_19] : memref<1x32xf32, #tpu.memory_space<vmem>>, vector<1x32xf32>
    %52 = vector.shape_cast %51 : vector<1x32xf32> to vector<32xf32>
    %53 = vector.shape_cast %52 : vector<32xf32> to vector<1x32xf32>
    %54 = vector.broadcast %53 : vector<1x32xf32> to vector<8x32xf32>
    %55 = arith.mulf %50, %54 : vector<8x32xf32>
    %c0_20 = arith.constant 0 : index
    %c0_21 = arith.constant 0 : index
    %56 = vector.load %arg5[%c0_20, %c0_21] : memref<1x32xf32, #tpu.memory_space<vmem>>, vector<1x32xf32>
    %57 = vector.shape_cast %56 : vector<1x32xf32> to vector<32xf32>
    %58 = vector.shape_cast %57 : vector<32xf32> to vector<1x32xf32>
    %59 = vector.broadcast %58 : vector<1x32xf32> to vector<8x32xf32>
    %60 = arith.addf %55, %59 : vector<8x32xf32>
    %61 = arith.truncf %60 : vector<8x32xf32> to vector<8x32xbf16>
    %62 = vector.shape_cast %32 : vector<8x32xbf16> to vector<1x8x32xbf16>
    %63 = vector.shape_cast %62 : vector<1x8x32xbf16> to vector<1x8x32xbf16>
    %64 = vector.broadcast %63 : vector<1x8x32xbf16> to vector<4x8x32xbf16>
    %65 = vector.shape_cast %61 : vector<8x32xbf16> to vector<1x8x32xbf16>
    %66 = vector.shape_cast %65 : vector<1x8x32xbf16> to vector<1x8x32xbf16>
    %67 = vector.broadcast %66 : vector<1x8x32xbf16> to vector<4x8x32xbf16>
    %c0_22 = arith.constant 0 : index
    %c0_23 = arith.constant 0 : index
    %c0_24 = arith.constant 0 : index
    %68 = vector.load %arg6[%c0_22, %c0_23, %c0_24] : memref<4x32x8xbf16, #tpu.memory_space<vmem>>, vector<4x32x8xbf16>
    "tpu.trace_start"() <{level = 10 : i32, message = "hsd,hdf->hsf"}> : () -> ()
    %cst_25 = arith.constant dense<0.000000e+00> : vector<4x8x8xf32>
    %69 = tpu.matmul %64, %68, %cst_25 {dimension_numbers = #tpu.dot_dimension_numbers<[2], [1], [1], [2], [0, 0, 0, 1, 1, 2], [0], [0]>} : vector<4x8x32xbf16>, vector<4x32x8xbf16>, vector<4x8x8xf32> -> vector<4x8x8xf32>
    "tpu.trace_stop"() : () -> ()
    %c0_26 = arith.constant 0 : index
    %c0_27 = arith.constant 0 : index
    %c0_28 = arith.constant 0 : index
    %70 = vector.load %arg7[%c0_26, %c0_27, %c0_28] : memref<4x1x8xf32, #tpu.memory_space<vmem>>, vector<4x1x8xf32>
    %71 = vector.broadcast %70 : vector<4x1x8xf32> to vector<4x8x8xf32>
    %72 = arith.addf %69, %71 : vector<4x8x8xf32>
    %c0_29 = arith.constant 0 : index
    %c0_30 = arith.constant 0 : index
    %c0_31 = arith.constant 0 : index
    %73 = vector.load %arg8[%c0_29, %c0_30, %c0_31] : memref<4x32x8xbf16, #tpu.memory_space<vmem>>, vector<4x32x8xbf16>
    "tpu.trace_start"() <{level = 10 : i32, message = "hsd,hdf->hsf"}> : () -> ()
    %cst_32 = arith.constant dense<0.000000e+00> : vector<4x8x8xf32>
    %74 = tpu.matmul %67, %73, %cst_32 {dimension_numbers = #tpu.dot_dimension_numbers<[2], [1], [1], [2], [0, 0, 0, 1, 1, 2], [0], [0]>} : vector<4x8x32xbf16>, vector<4x32x8xbf16>, vector<4x8x8xf32> -> vector<4x8x8xf32>
    "tpu.trace_stop"() : () -> ()
    %c0_33 = arith.constant 0 : index
    %c0_34 = arith.constant 0 : index
    %c0_35 = arith.constant 0 : index
    %75 = vector.load %arg9[%c0_33, %c0_34, %c0_35] : memref<4x1x8xf32, #tpu.memory_space<vmem>>, vector<4x1x8xf32>
    %76 = vector.broadcast %75 : vector<4x1x8xf32> to vector<4x8x8xf32>
    %77 = arith.addf %74, %76 : vector<4x8x8xf32>
    %c0_36 = arith.constant 0 : index
    %c0_37 = arith.constant 0 : index
    %c0_38 = arith.constant 0 : index
    %78 = vector.load %arg10[%c0_36, %c0_37, %c0_38] : memref<4x32x8xbf16, #tpu.memory_space<vmem>>, vector<4x32x8xbf16>
    "tpu.trace_start"() <{level = 10 : i32, message = "hsd,hdf->hsf"}> : () -> ()
    %cst_39 = arith.constant dense<0.000000e+00> : vector<4x8x8xf32>
    %79 = tpu.matmul %67, %78, %cst_39 {dimension_numbers = #tpu.dot_dimension_numbers<[2], [1], [1], [2], [0, 0, 0, 1, 1, 2], [0], [0]>} : vector<4x8x32xbf16>, vector<4x32x8xbf16>, vector<4x8x8xf32> -> vector<4x8x8xf32>
    "tpu.trace_stop"() : () -> ()
    %c0_40 = arith.constant 0 : index
    %c0_41 = arith.constant 0 : index
    %c0_42 = arith.constant 0 : index
    %80 = vector.load %arg11[%c0_40, %c0_41, %c0_42] : memref<4x1x8xf32, #tpu.memory_space<vmem>>, vector<4x1x8xf32>
    %81 = vector.broadcast %80 : vector<4x1x8xf32> to vector<4x8x8xf32>
    %82 = arith.addf %79, %81 : vector<4x8x8xf32>
    %83 = arith.truncf %72 : vector<4x8x8xf32> to vector<4x8x8xbf16>
    %84 = arith.truncf %77 : vector<4x8x8xf32> to vector<4x8x8xbf16>
    "tpu.trace_start"() <{level = 10 : i32, message = "hqf,hkf->hqk"}> : () -> ()
    %cst_43 = arith.constant dense<0.000000e+00> : vector<4x8x8xf32>
    %85 = tpu.matmul %83, %84, %cst_43 {dimension_numbers = #tpu.dot_dimension_numbers<[2], [2], [1], [1], [0, 0, 0, 1, 1, 1], [0], [0]>} : vector<4x8x8xbf16>, vector<4x8x8xbf16>, vector<4x8x8xf32> -> vector<4x8x8xf32>
    "tpu.trace_stop"() : () -> ()
    %cst_44 = arith.constant dense<0xFF800000> : vector<4x8xf32>
    %86 = vector.multi_reduction <maximumf>, %85, %cst_44 [2] : vector<4x8x8xf32> to vector<4x8xf32>
    %87 = vector.shape_cast %86 : vector<4x8xf32> to vector<4x8x1xf32>
    %88 = vector.broadcast %87 : vector<4x8x1xf32> to vector<4x8x8xf32>
    %89 = arith.subf %85, %88 : vector<4x8x8xf32>
    %90 = math.exp %89 : vector<4x8x8xf32>
    %cst_45 = arith.constant dense<0.000000e+00> : vector<4x8xf32>
    %91 = vector.multi_reduction <add>, %90, %cst_45 [2] : vector<4x8x8xf32> to vector<4x8xf32>
    %92 = vector.shape_cast %91 : vector<4x8xf32> to vector<4x8x1xf32>
    %93 = tpu.reciprocal %92 {approx = true} : vector<4x8x1xf32> -> vector<4x8x1xf32>
    %94 = vector.broadcast %93 : vector<4x8x1xf32> to vector<4x8x8xf32>
    %95 = arith.mulf %90, %94 : vector<4x8x8xf32>
    %96 = arith.truncf %95 : vector<4x8x8xf32> to vector<4x8x8xbf16>
    %97 = arith.truncf %82 : vector<4x8x8xf32> to vector<4x8x8xbf16>
    "tpu.trace_start"() <{level = 10 : i32, message = "hqk,hkf->hqf"}> : () -> ()
    %cst_46 = arith.constant dense<0.000000e+00> : vector<4x8x8xf32>
    %98 = tpu.matmul %96, %97, %cst_46 {dimension_numbers = #tpu.dot_dimension_numbers<[2], [1], [1], [2], [0, 0, 0, 1, 1, 2], [0], [0]>} : vector<4x8x8xbf16>, vector<4x8x8xbf16>, vector<4x8x8xf32> -> vector<4x8x8xf32>
    "tpu.trace_stop"() : () -> ()
    %99 = arith.truncf %98 : vector<4x8x8xf32> to vector<4x8x8xbf16>
    %c0_47 = arith.constant 0 : index
    %c0_48 = arith.constant 0 : index
    %c0_49 = arith.constant 0 : index
    %100 = vector.load %arg12[%c0_47, %c0_48, %c0_49] : memref<4x8x32xbf16, #tpu.memory_space<vmem>>, vector<4x8x32xbf16>
    "tpu.trace_start"() <{level = 10 : i32, message = "hqf,hfd->hqd"}> : () -> ()
    %cst_50 = arith.constant dense<0.000000e+00> : vector<4x8x32xf32>
    %101 = tpu.matmul %99, %100, %cst_50 {dimension_numbers = #tpu.dot_dimension_numbers<[2], [1], [1], [2], [0, 0, 0, 1, 1, 2], [0], [0]>} : vector<4x8x8xbf16>, vector<4x8x32xbf16>, vector<4x8x32xf32> -> vector<4x8x32xf32>
    "tpu.trace_stop"() : () -> ()
    %cst_51 = arith.constant dense<0.000000e+00> : vector<8x32xf32>
    %102 = vector.multi_reduction <add>, %101, %cst_51 [0] : vector<4x8x32xf32> to vector<8x32xf32>
    %c0_52 = arith.constant 0 : index
    %c0_53 = arith.constant 0 : index
    %103 = vector.load %arg13[%c0_52, %c0_53] : memref<1x32xf32, #tpu.memory_space<vmem>>, vector<1x32xf32>
    %104 = vector.shape_cast %103 : vector<1x32xf32> to vector<32xf32>
    %105 = vector.shape_cast %104 : vector<32xf32> to vector<1x32xf32>
    %106 = vector.broadcast %105 : vector<1x32xf32> to vector<8x32xf32>
    %107 = arith.addf %102, %106 : vector<8x32xf32>
    %cst_54 = arith.constant dense<0.000000e+00> : vector<8xf32>
    %108 = vector.multi_reduction <add>, %107, %cst_54 [1] : vector<8x32xf32> to vector<8xf32>
    %109 = vector.shape_cast %108 : vector<8xf32> to vector<8x1xf32>
    %cst_55 = arith.constant 3.200000e+01 : f32
    %110 = vector.broadcast %cst_55 : f32 to vector<8x1xf32>
    %111 = arith.divf %109, %110 : vector<8x1xf32>
    %112 = vector.broadcast %111 : vector<8x1xf32> to vector<8x32xf32>
    %113 = arith.subf %107, %112 : vector<8x32xf32>
    %114 = arith.mulf %113, %113 : vector<8x32xf32>
    %cst_56 = arith.constant dense<0.000000e+00> : vector<8xf32>
    %115 = vector.multi_reduction <add>, %114, %cst_56 [1] : vector<8x32xf32> to vector<8xf32>
    %116 = vector.shape_cast %115 : vector<8xf32> to vector<8x1xf32>
    %cst_57 = arith.constant 3.200000e+01 : f32
    %117 = vector.broadcast %cst_57 : f32 to vector<8x1xf32>
    %118 = arith.divf %116, %117 : vector<8x1xf32>
    %119 = vector.broadcast %111 : vector<8x1xf32> to vector<8x32xf32>
    %120 = arith.subf %107, %119 : vector<8x32xf32>
    %cst_58 = arith.constant 9.99999974E-6 : f32
    %121 = vector.broadcast %cst_58 : f32 to vector<8x1xf32>
    %122 = arith.addf %118, %121 : vector<8x1xf32>
    %123 = math.rsqrt %122 : vector<8x1xf32>
    %124 = vector.broadcast %123 : vector<8x1xf32> to vector<8x32xf32>
    %125 = arith.mulf %120, %124 : vector<8x32xf32>
    %c0_59 = arith.constant 0 : index
    %c0_60 = arith.constant 0 : index
    %126 = vector.load %arg14[%c0_59, %c0_60] : memref<1x32xf32, #tpu.memory_space<vmem>>, vector<1x32xf32>
    %127 = vector.shape_cast %126 : vector<1x32xf32> to vector<32xf32>
    %128 = vector.shape_cast %127 : vector<32xf32> to vector<1x32xf32>
    %129 = vector.broadcast %128 : vector<1x32xf32> to vector<8x32xf32>
    %130 = arith.mulf %125, %129 : vector<8x32xf32>
    %c0_61 = arith.constant 0 : index
    %c0_62 = arith.constant 0 : index
    %131 = vector.load %arg15[%c0_61, %c0_62] : memref<1x32xf32, #tpu.memory_space<vmem>>, vector<1x32xf32>
    %132 = vector.shape_cast %131 : vector<1x32xf32> to vector<32xf32>
    %133 = vector.shape_cast %132 : vector<32xf32> to vector<1x32xf32>
    %134 = vector.broadcast %133 : vector<1x32xf32> to vector<8x32xf32>
    %135 = arith.addf %130, %134 : vector<8x32xf32>
    %136 = arith.addf %1, %135 : vector<8x32xf32>
    %cst_63 = arith.constant dense<0.000000e+00> : vector<8xf32>
    %137 = vector.multi_reduction <add>, %136, %cst_63 [1] : vector<8x32xf32> to vector<8xf32>
    %138 = vector.shape_cast %137 : vector<8xf32> to vector<8x1xf32>
    %cst_64 = arith.constant 3.200000e+01 : f32
    %139 = vector.broadcast %cst_64 : f32 to vector<8x1xf32>
    %140 = arith.divf %138, %139 : vector<8x1xf32>
    %141 = vector.broadcast %140 : vector<8x1xf32> to vector<8x32xf32>
    %142 = arith.subf %136, %141 : vector<8x32xf32>
    %143 = arith.mulf %142, %142 : vector<8x32xf32>
    %cst_65 = arith.constant dense<0.000000e+00> : vector<8xf32>
    %144 = vector.multi_reduction <add>, %143, %cst_65 [1] : vector<8x32xf32> to vector<8xf32>
    %145 = vector.shape_cast %144 : vector<8xf32> to vector<8x1xf32>
    %cst_66 = arith.constant 3.200000e+01 : f32
    %146 = vector.broadcast %cst_66 : f32 to vector<8x1xf32>
    %147 = arith.divf %145, %146 : vector<8x1xf32>
    %148 = vector.broadcast %140 : vector<8x1xf32> to vector<8x32xf32>
    %149 = arith.subf %136, %148 : vector<8x32xf32>
    %cst_67 = arith.constant 9.99999974E-6 : f32
    %150 = vector.broadcast %cst_67 : f32 to vector<8x1xf32>
    %151 = arith.addf %147, %150 : vector<8x1xf32>
    %152 = math.rsqrt %151 : vector<8x1xf32>
    %153 = vector.broadcast %152 : vector<8x1xf32> to vector<8x32xf32>
    %154 = arith.mulf %149, %153 : vector<8x32xf32>
    %c0_68 = arith.constant 0 : index
    %c0_69 = arith.constant 0 : index
    %155 = vector.load %arg16[%c0_68, %c0_69] : memref<1x32xf32, #tpu.memory_space<vmem>>, vector<1x32xf32>
    %156 = vector.shape_cast %155 : vector<1x32xf32> to vector<32xf32>
    %157 = vector.shape_cast %156 : vector<32xf32> to vector<1x32xf32>
    %158 = vector.broadcast %157 : vector<1x32xf32> to vector<8x32xf32>
    %159 = arith.mulf %154, %158 : vector<8x32xf32>
    %c0_70 = arith.constant 0 : index
    %c0_71 = arith.constant 0 : index
    %160 = vector.load %arg17[%c0_70, %c0_71] : memref<1x32xf32, #tpu.memory_space<vmem>>, vector<1x32xf32>
    %161 = vector.shape_cast %160 : vector<1x32xf32> to vector<32xf32>
    %162 = vector.shape_cast %161 : vector<32xf32> to vector<1x32xf32>
    %163 = vector.broadcast %162 : vector<1x32xf32> to vector<8x32xf32>
    %164 = arith.addf %159, %163 : vector<8x32xf32>
    %165 = arith.truncf %164 : vector<8x32xf32> to vector<8x32xbf16>
    %c0_72 = arith.constant 0 : index
    %c0_73 = arith.constant 0 : index
    %166 = vector.load %arg18[%c0_72, %c0_73] : memref<32x128xbf16, #tpu.memory_space<vmem>>, vector<32x128xbf16>
    %cst_74 = arith.constant dense<0.000000e+00> : vector<8x128xf32>
    %167 = tpu.matmul %165, %166, %cst_74 {dimension_numbers = #tpu.dot_dimension_numbers<[1], [0], [0], [1], [0, 0, 1, 1], [], []>} : vector<8x32xbf16>, vector<32x128xbf16>, vector<8x128xf32> -> vector<8x128xf32>
    %c0_75 = arith.constant 0 : index
    %c0_76 = arith.constant 0 : index
    %168 = vector.load %arg19[%c0_75, %c0_76] : memref<1x128xf32, #tpu.memory_space<vmem>>, vector<1x128xf32>
    %169 = vector.shape_cast %168 : vector<1x128xf32> to vector<128xf32>
    %170 = vector.shape_cast %169 : vector<128xf32> to vector<1x128xf32>
    %171 = vector.broadcast %170 : vector<1x128xf32> to vector<8x128xf32>
    %172 = arith.addf %167, %171 : vector<8x128xf32>
    %cst_77 = arith.constant 0.000000e+00 : f32
    %173 = vector.broadcast %cst_77 : f32 to vector<8x128xf32>
    %174 = arith.maximumf %172, %173 : vector<8x128xf32>
    %175 = arith.truncf %174 : vector<8x128xf32> to vector<8x128xbf16>
    %c0_78 = arith.constant 0 : index
    %c0_79 = arith.constant 0 : index
    %176 = vector.load %arg20[%c0_78, %c0_79] : memref<128x32xbf16, #tpu.memory_space<vmem>>, vector<128x32xbf16>
    %cst_80 = arith.constant dense<0.000000e+00> : vector<8x32xf32>
    %177 = tpu.matmul %175, %176, %cst_80 {dimension_numbers = #tpu.dot_dimension_numbers<[1], [0], [0], [1], [0, 0, 1, 1], [], []>} : vector<8x128xbf16>, vector<128x32xbf16>, vector<8x32xf32> -> vector<8x32xf32>
    %c0_81 = arith.constant 0 : index
    %c0_82 = arith.constant 0 : index
    %178 = vector.load %arg21[%c0_81, %c0_82] : memref<1x32xf32, #tpu.memory_space<vmem>>, vector<1x32xf32>
    %179 = vector.shape_cast %178 : vector<1x32xf32> to vector<32xf32>
    %180 = vector.shape_cast %179 : vector<32xf32> to vector<1x32xf32>
    %181 = vector.broadcast %180 : vector<1x32xf32> to vector<8x32xf32>
    %182 = arith.addf %177, %181 : vector<8x32xf32>
    %cst_83 = arith.constant dense<0.000000e+00> : vector<8xf32>
    %183 = vector.multi_reduction <add>, %182, %cst_83 [1] : vector<8x32xf32> to vector<8xf32>
    %184 = vector.shape_cast %183 : vector<8xf32> to vector<8x1xf32>
    %cst_84 = arith.constant 3.200000e+01 : f32
    %185 = vector.broadcast %cst_84 : f32 to vector<8x1xf32>
    %186 = arith.divf %184, %185 : vector<8x1xf32>
    %187 = vector.broadcast %186 : vector<8x1xf32> to vector<8x32xf32>
    %188 = arith.subf %182, %187 : vector<8x32xf32>
    %189 = arith.mulf %188, %188 : vector<8x32xf32>
    %cst_85 = arith.constant dense<0.000000e+00> : vector<8xf32>
    %190 = vector.multi_reduction <add>, %189, %cst_85 [1] : vector<8x32xf32> to vector<8xf32>
    %191 = vector.shape_cast %190 : vector<8xf32> to vector<8x1xf32>
    %cst_86 = arith.constant 3.200000e+01 : f32
    %192 = vector.broadcast %cst_86 : f32 to vector<8x1xf32>
    %193 = arith.divf %191, %192 : vector<8x1xf32>
    %194 = vector.broadcast %186 : vector<8x1xf32> to vector<8x32xf32>
    %195 = arith.subf %182, %194 : vector<8x32xf32>
    %cst_87 = arith.constant 9.99999974E-6 : f32
    %196 = vector.broadcast %cst_87 : f32 to vector<8x1xf32>
    %197 = arith.addf %193, %196 : vector<8x1xf32>
    %198 = math.rsqrt %197 : vector<8x1xf32>
    %199 = vector.broadcast %198 : vector<8x1xf32> to vector<8x32xf32>
    %200 = arith.mulf %195, %199 : vector<8x32xf32>
    %c0_88 = arith.constant 0 : index
    %c0_89 = arith.constant 0 : index
    %201 = vector.load %arg22[%c0_88, %c0_89] : memref<1x32xf32, #tpu.memory_space<vmem>>, vector<1x32xf32>
    %202 = vector.shape_cast %201 : vector<1x32xf32> to vector<32xf32>
    %203 = vector.shape_cast %202 : vector<32xf32> to vector<1x32xf32>
    %204 = vector.broadcast %203 : vector<1x32xf32> to vector<8x32xf32>
    %205 = arith.mulf %200, %204 : vector<8x32xf32>
    %c0_90 = arith.constant 0 : index
    %c0_91 = arith.constant 0 : index
    %206 = vector.load %arg23[%c0_90, %c0_91] : memref<1x32xf32, #tpu.memory_space<vmem>>, vector<1x32xf32>
    %207 = vector.shape_cast %206 : vector<1x32xf32> to vector<32xf32>
    %208 = vector.shape_cast %207 : vector<32xf32> to vector<1x32xf32>
    %209 = vector.broadcast %208 : vector<1x32xf32> to vector<8x32xf32>
    %210 = arith.addf %205, %209 : vector<8x32xf32>
    %211 = arith.addf %136, %210 : vector<8x32xf32>
    %c0_92 = arith.constant 0 : index
    %c0_93 = arith.constant 0 : index
    %c0_94 = arith.constant 0 : index
    %212 = vector.load %arg24[%c0_92, %c0_93, %c0_94] : memref<1x8x32xf32, #tpu.memory_space<vmem>>, vector<1x8x32xf32>
    %213 = vector.shape_cast %212 : vector<1x8x32xf32> to vector<8x32xf32>
    %214 = vector.shape_cast %211 : vector<8x32xf32> to vector<1x8x32xf32>
    tpu.vector_store %arg24[%c0_92, %c0_93, %c0_94], %214 {strides = array<i32>} : memref<1x8x32xf32, #tpu.memory_space<vmem>>, vector<1x8x32xf32>,
    return
  }
  func.func @transform_0(%arg0: i32, %arg1: i32) -> (i32, i32, i32) {
    %c0_i32 = arith.constant 0 : i32
    %c0_i32_0 = arith.constant 0 : i32
    return %arg0, %arg1, %c0_i32 : i32, i32, i32
  }
  func.func @transform_1(%arg0: i32, %arg1: i32) -> (i32, i32, i32) {
    %c0_i32 = arith.constant 0 : i32
    %c0_i32_0 = arith.constant 0 : i32
    %c0_i32_1 = arith.constant 0 : i32
    return %arg0, %c0_i32, %c0_i32_0 : i32, i32, i32
  }
  func.func @transform_2(%arg0: i32, %arg1: i32) -> (i32, i32) {
    %c0_i32 = arith.constant 0 : i32
    %c0_i32_0 = arith.constant 0 : i32
    %c0_i32_1 = arith.constant 0 : i32
    return %c0_i32, %c0_i32_0 : i32, i32
  }
  func.func @transform_3(%arg0: i32, %arg1: i32) -> (i32, i32) {
    %c0_i32 = arith.constant 0 : i32
    %c0_i32_0 = arith.constant 0 : i32
    %c0_i32_1 = arith.constant 0 : i32
    return %c0_i32, %c0_i32_0 : i32, i32
  }
  func.func @transform_4(%arg0: i32, %arg1: i32) -> (i32, i32, i32) {
    %c0_i32 = arith.constant 0 : i32
    %c0_i32_0 = arith.constant 0 : i32
    %c0_i32_1 = arith.constant 0 : i32
    %c0_i32_2 = arith.constant 0 : i32
    return %c0_i32, %c0_i32_0, %c0_i32_1 : i32, i32, i32
  }
  func.func @transform_5(%arg0: i32, %arg1: i32) -> (i32, i32, i32) {
    %c0_i32 = arith.constant 0 : i32
    %c0_i32_0 = arith.constant 0 : i32
    %c0_i32_1 = arith.constant 0 : i32
    %c0_i32_2 = arith.constant 0 : i32
    return %c0_i32, %c0_i32_0, %c0_i32_1 : i32, i32, i32
  }
  func.func @transform_6(%arg0: i32, %arg1: i32) -> (i32, i32, i32) {
    %c0_i32 = arith.constant 0 : i32
    %c0_i32_0 = arith.constant 0 : i32
    %c0_i32_1 = arith.constant 0 : i32
    %c0_i32_2 = arith.constant 0 : i32
    return %c0_i32, %c0_i32_0, %c0_i32_1 : i32, i32, i32
  }
  func.func @transform_7(%arg0: i32, %arg1: i32) -> (i32, i32, i32) {
    %c0_i32 = arith.constant 0 : i32
    %c0_i32_0 = arith.constant 0 : i32
    %c0_i32_1 = arith.constant 0 : i32
    %c0_i32_2 = arith.constant 0 : i32
    return %c0_i32, %c0_i32_0, %c0_i32_1 : i32, i32, i32
  }
  func.func @transform_8(%arg0: i32, %arg1: i32) -> (i32, i32, i32) {
    %c0_i32 = arith.constant 0 : i32
    %c0_i32_0 = arith.constant 0 : i32
    %c0_i32_1 = arith.constant 0 : i32
    %c0_i32_2 = arith.constant 0 : i32
    return %c0_i32, %c0_i32_0, %c0_i32_1 : i32, i32, i32
  }
  func.func @transform_9(%arg0: i32, %arg1: i32) -> (i32, i32, i32) {
    %c0_i32 = arith.constant 0 : i32
    %c0_i32_0 = arith.constant 0 : i32
    %c0_i32_1 = arith.constant 0 : i32
    %c0_i32_2 = arith.constant 0 : i32
    return %c0_i32, %c0_i32_0, %c0_i32_1 : i32, i32, i32
  }
  func.func @transform_10(%arg0: i32, %arg1: i32) -> (i32, i32, i32) {
    %c0_i32 = arith.constant 0 : i32
    %c0_i32_0 = arith.constant 0 : i32
    %c0_i32_1 = arith.constant 0 : i32
    %c0_i32_2 = arith.constant 0 : i32
    return %c0_i32, %c0_i32_0, %c0_i32_1 : i32, i32, i32
  }
  func.func @transform_11(%arg0: i32, %arg1: i32) -> (i32, i32) {
    %c0_i32 = arith.constant 0 : i32
    %c0_i32_0 = arith.constant 0 : i32
    %c0_i32_1 = arith.constant 0 : i32
    return %c0_i32, %c0_i32_0 : i32, i32
  }
  func.func @transform_12(%arg0: i32, %arg1: i32) -> (i32, i32) {
    %c0_i32 = arith.constant 0 : i32
    %c0_i32_0 = arith.constant 0 : i32
    %c0_i32_1 = arith.constant 0 : i32
    return %c0_i32, %c0_i32_0 : i32, i32
  }
  func.func @transform_13(%arg0: i32, %arg1: i32) -> (i32, i32) {
    %c0_i32 = arith.constant 0 : i32
    %c0_i32_0 = arith.constant 0 : i32
    %c0_i32_1 = arith.constant 0 : i32
    return %c0_i32, %c0_i32_0 : i32, i32
  }
  func.func @transform_14(%arg0: i32, %arg1: i32) -> (i32, i32) {
    %c0_i32 = arith.constant 0 : i32
    %c0_i32_0 = arith.constant 0 : i32
    %c0_i32_1 = arith.constant 0 : i32
    return %c0_i32, %c0_i32_0 : i32, i32
  }
  func.func @transform_15(%arg0: i32, %arg1: i32) -> (i32, i32) {
    %c0_i32 = arith.constant 0 : i32
    %c0_i32_0 = arith.constant 0 : i32
    %c0_i32_1 = arith.constant 0 : i32
    return %c0_i32, %c0_i32_0 : i32, i32
  }
  func.func @transform_16(%arg0: i32, %arg1: i32) -> (i32, i32) {
    %c0_i32 = arith.constant 0 : i32
    %c0_i32_0 = arith.constant 0 : i32
    %c0_i32_1 = arith.constant 0 : i32
    return %c0_i32, %c0_i32_0 : i32, i32
  }
  func.func @transform_17(%arg0: i32, %arg1: i32) -> (i32, i32) {
    %c0_i32 = arith.constant 0 : i32
    %c0_i32_0 = arith.constant 0 : i32
    %c0_i32_1 = arith.constant 0 : i32
    return %c0_i32, %c0_i32_0 : i32, i32
  }
  func.func @transform_18(%arg0: i32, %arg1: i32) -> (i32, i32) {
    %c0_i32 = arith.constant 0 : i32
    %c0_i32_0 = arith.constant 0 : i32
    %c0_i32_1 = arith.constant 0 : i32
    return %c0_i32, %c0_i32_0 : i32, i32
  }
  func.func @transform_19(%arg0: i32, %arg1: i32) -> (i32, i32) {
    %c0_i32 = arith.constant 0 : i32
    %c0_i32_0 = arith.constant 0 : i32
    %c0_i32_1 = arith.constant 0 : i32
    return %c0_i32, %c0_i32_0 : i32, i32
  }
  func.func @transform_20(%arg0: i32, %arg1: i32) -> (i32, i32) {
    %c0_i32 = arith.constant 0 : i32
    %c0_i32_0 = arith.constant 0 : i32
    %c0_i32_1 = arith.constant 0 : i32
    return %c0_i32, %c0_i32_0 : i32, i32
  }
  func.func @transform_21(%arg0: i32, %arg1: i32) -> (i32, i32) {
    %c0_i32 = arith.constant 0 : i32
    %c0_i32_0 = arith.constant 0 : i32
    %c0_i32_1 = arith.constant 0 : i32
    return %c0_i32, %c0_i32_0 : i32, i32
  }
  func.func @transform_22(%arg0: i32, %arg1: i32) -> (i32, i32, i32) {
    %c0_i32 = arith.constant 0 : i32
    %c0_i32_0 = arith.constant 0 : i32
    return %arg0, %arg1, %c0_i32 : i32, i32, i32
  }
}

</mosaic_0001>

<llo_original>
// kernel: tpu_custom_call.1
$region0: #{tpu_custom_call.1}
  #allocation0 [shape = 'u32[]', space=smem, size = 0x4, offset = 0x4, fixed_abs, tag = 'smem constant byte address 0x4 - core index']
  #allocation1 [shape = 'u32[144,128]{1,0:T(1,128)}', space=vmem, size = 0x12000, scoped, tag = 'internal scratch']
  %s0 = inlined_call_operand.vmem [shape: f32[2,8,32], index: 0, kind: input, shape index: {}]
  %s1 = inlined_call_operand.vmem [shape: f32[2,8,32], index: 1, kind: input, shape index: {}]
  %s2 = inlined_call_operand.vmem [shape: f32[1,32], index: 2, kind: input, shape index: {}]
  %s3 = inlined_call_operand.vmem [shape: f32[1,32], index: 3, kind: input, shape index: {}]
  %s4 = inlined_call_operand.vmem [shape: bf16[4,32,8], index: 4, kind: input, shape index: {}]
  %s5 = inlined_call_operand.vmem [shape: f32[4,1,8], index: 5, kind: input, shape index: {}]
  %s6 = inlined_call_operand.vmem [shape: bf16[4,32,8], index: 6, kind: input, shape index: {}]
  %s7 = inlined_call_operand.vmem [shape: f32[4,1,8], index: 7, kind: input, shape index: {}]
  %s8 = inlined_call_operand.vmem [shape: bf16[4,32,8], index: 8, kind: input, shape index: {}]
  %s9 = inlined_call_operand.vmem [shape: f32[4,1,8], index: 9, kind: input, shape index: {}]
  %s10 = inlined_call_operand.vmem [shape: bf16[4,8,32], index: 10, kind: input, shape index: {}]
  %s11 = inlined_call_operand.vmem [shape: f32[1,32], index: 11, kind: input, shape index: {}]
  %s12 = inlined_call_operand.vmem [shape: f32[1,32], index: 12, kind: input, shape index: {}]
  %s13 = inlined_call_operand.vmem [shape: f32[1,32], index: 13, kind: input, shape index: {}]
  %s14 = inlined_call_operand.vmem [shape: f32[1,32], index: 14, kind: input, shape index: {}]
  %s15 = inlined_call_operand.vmem [shape: f32[1,32], index: 15, kind: input, shape index: {}]
  %s16 = inlined_call_operand.vmem [shape: bf16[32,128], index: 16, kind: input, shape index: {}]
  %s17 = inlined_call_operand.vmem [shape: f32[1,128], index: 17, kind: input, shape index: {}]
  %s18 = inlined_call_operand.vmem [shape: bf16[128,32], index: 18, kind: input, shape index: {}]
  %s19 = inlined_call_operand.vmem [shape: f32[1,32], index: 19, kind: input, shape index: {}]
  %s20 = inlined_call_operand.vmem [shape: f32[1,32], index: 20, kind: input, shape index: {}]
  %s21 = inlined_call_operand.vmem [shape: f32[1,32], index: 21, kind: input, shape index: {}]
  %s22 = inlined_call_operand.hbm [shape: f32[2,8,32], index: 22, kind: output, shape index: {}]
  %s23 = sld [smem:[#allocation0]]
  $region121: #{tpu_custom_call.1} parent=0
    _
  %s25 = ssub.s32 1, %s23
  %s26 = scalar_select 0, %s25, %s23
  $region1: #{tpu_custom_call.1} parent=0
    #allocation2 [shape = 'u8[8192]{0}', space=vmem, size = 0x2000, scoped, tag = 'output window, operand 0']
    #allocation3 [shape = 's32[2]{0}', space=sflag, size = 0x8, scoped, tag = 'scoped memory for tpu_custom_call.1']
    %27 = vsyncpa [#allocation3], 0
    %s28 = scalar_lea.sflag [#allocation3], 1
    %29 = vsyncpa %s28, 0
    loop: start=0, step=1, limit=4
    $region2: #{tpu_custom_call.1} parent=1 // loop_pre_header
      _
    $region3: #{tpu_custom_call.1} parent=1 // loop_header
      %s31 = sphi 0, %s35
      %p32 = scmp.ge.s32.totalorder %s31, 4
      %s38 = sphi 0, %s50
      %s39 = sphi 0, %s46
      %s40 = sphi 0, %s38
      %s41 = sphi 0, %s39
      %s42 = sphi 0, %s40
      %s43 = sphi 0, %s41
      %s55 = sphi 0, %s57
      %s58 = sphi 0, %s55
      %s59 = sphi 0, %s58
      %s75 = sphi 0, %s59
      %s81 = sphi 0, %s83
      %s84 = sphi 0, %s81
      %s85 = sphi 0, %s84
      %s101 = sphi 0, %s85
      %s105 = sphi 0, %s105
      %s107 = sphi 0, %s105
      %s108 = sphi 0, %s107
      %s122 = sphi 0, %s108
      %s126 = sphi 0, %s126
      %s128 = sphi 0, %s126
      %s129 = sphi 0, %s128
      %s143 = sphi 0, %s129
      %s147 = sphi 0, %s147
      %s149 = sphi 0, %s147
      %s150 = sphi 0, %s149
      %s164 = sphi 0, %s150
      %s168 = sphi 0, %s168
      %s170 = sphi 0, %s168
      %s171 = sphi 0, %s170
      %s185 = sphi 0, %s171
      %s189 = sphi 0, %s189
      %s191 = sphi 0, %s189
      %s192 = sphi 0, %s191
      %s206 = sphi 0, %s192
      %s210 = sphi 0, %s210
      %s212 = sphi 0, %s210
      %s213 = sphi 0, %s212
      %s227 = sphi 0, %s213
      %s231 = sphi 0, %s231
      %s233 = sphi 0, %s231
      %s234 = sphi 0, %s233
      %s248 = sphi 0, %s234
      %s252 = sphi 0, %s252
      %s254 = sphi 0, %s252
      %s255 = sphi 0, %s254
      %s269 = sphi 0, %s255
      %s273 = sphi 0, %s273
      %s275 = sphi 0, %s273
      %s276 = sphi 0, %s275
      %s290 = sphi 0, %s276
      %s294 = sphi 0, %s294
      %s296 = sphi 0, %s294
      %s297 = sphi 0, %s296
      %s311 = sphi 0, %s297
      %s315 = sphi 0, %s315
      %s317 = sphi 0, %s315
      %s318 = sphi 0, %s317
      %s332 = sphi 0, %s318
      %s336 = sphi 0, %s336
      %s338 = sphi 0, %s336
      %s339 = sphi 0, %s338
      %s353 = sphi 0, %s339
      %s357 = sphi 0, %s357
      %s359 = sphi 0, %s357
      %s360 = sphi 0, %s359
      %s374 = sphi 0, %s360
      %s378 = sphi 0, %s378
      %s380 = sphi 0, %s378
      %s381 = sphi 0, %s380
      %s395 = sphi 0, %s381
      %s399 = sphi 0, %s399
      %s401 = sphi 0, %s399
      %s402 = sphi 0, %s401
      %s416 = sphi 0, %s402
      %s420 = sphi 0, %s420
      %s422 = sphi 0, %s420
      %s423 = sphi 0, %s422
      %s437 = sphi 0, %s423
      %s441 = sphi 0, %s441
      %s443 = sphi 0, %s441
      %s444 = sphi 0, %s443
      %s458 = sphi 0, %s444
      %s462 = sphi 0, %s462
      %s464 = sphi 0, %s462
      %s465 = sphi 0, %s464
      %s479 = sphi 0, %s465
      %s483 = sphi 0, %s483
      %s485 = sphi 0, %s483
      %s486 = sphi 0, %s485
      %s500 = sphi 0, %s486
      %s504 = sphi 0, %s504
      %s506 = sphi 0, %s504
      %s507 = sphi 0, %s506
      %s521 = sphi 0, %s507
      %s529 = sphi 0, %s531
      %s532 = sphi 0, %s529
      %s533 = sphi 0, %s532
      %s549 = sphi 0, %s533
    $region4: #{tpu_custom_call.1} parent=1 // loop_header_branch
      %34 = sbr.rel (%p32) target = $region8
    $region5: #{tpu_custom_call.1} parent=1 // loop_body
      %s36 = ssub.s32 %s31, 1
      %s37 = ssub.s32 %s31, 2
      %s44 = sadd.s32 1, %s39
      %p45 = scmp.ge.s32.totalorder %s44, 1
      %s46 = scalar_select %p45, 0, %s44
      %s47 = sadd.s32 1, %s38
      %s48 = scalar_select %p45, %s47, %s38
      %p49 = scmp.ge.s32.totalorder %s48, 2
      %s50 = scalar_select %p49, 0, %s48
      %s51 = ssub.s32 %s38, %s50
      %s52 = ssub.s32 %s39, %s46
      %s53 = sor.u32 %s51, %s52
      %p54 = scmp.eq.s32.totalorder %s53, 0
      %s56 = sadd.s32 %s55, 1
      %s57 = scalar_select %p54, %s55, %s56
      %p60 = pneg %p54
      %p61 = scmp.eq.s32.totalorder %s31, 1
      %p62 = por %p60, %p61
      %p63 = scmp.ne.s32.totalorder %s55, %s58
      %p64 = scmp.eq.s32.totalorder %s31, 0
      %p65 = por %p63, %p64
      %p66 = scmp.ne.s32.totalorder %s55, %s58
      %p67 = scmp.eq.s32.totalorder %s36, 1
      %p68 = por %p66, %p67
      %p69 = scmp.ne.s32.totalorder %s58, %s59
      %p70 = scmp.eq.s32.totalorder %s36, 0
      %p71 = por %p69, %p70
      %p72 = scmp.ne.s32.totalorder %s58, %s59
      %p73 = scmp.eq.s32.totalorder %s37, 1
      %p74 = por %p72, %p73
      %p76 = scmp.ne.s32.totalorder %s59, %s75
      %p77 = scmp.eq.s32.totalorder %s37, 0
      %p78 = por %p76, %p77
      %s79 = ssub.s32 %s38, %s50
      %p80 = scmp.eq.s32.totalorder %s79, 0
      %s82 = sadd.s32 %s81, 1
      %s83 = scalar_select %p80, %s81, %s82
      %p86 = pneg %p80
      %p87 = scmp.eq.s32.totalorder %s31, 1
      %p88 = por %p86, %p87
      %p89 = scmp.ne.s32.totalorder %s81, %s84
      %p90 = scmp.eq.s32.totalorder %s31, 0
      %p91 = por %p89, %p90
      %p92 = scmp.ne.s32.totalorder %s81, %s84
      %p93 = scmp.eq.s32.totalorder %s36, 1
      %p94 = por %p92, %p93
      %p95 = scmp.ne.s32.totalorder %s84, %s85
      %p96 = scmp.eq.s32.totalorder %s36, 0
      %p97 = por %p95, %p96
      %p98 = scmp.ne.s32.totalorder %s84, %s85
      %p99 = scmp.eq.s32.totalorder %s37, 1
      %p100 = por %p98, %p99
      %p102 = scmp.ne.s32.totalorder %s85, %s101
      %p103 = scmp.eq.s32.totalorder %s37, 0
      %p104 = por %p102, %p103
      %s106 = sadd.s32 %s105, 1
      %p109 = scmp.eq.s32.totalorder %s31, 1
      %p110 = scmp.ne.s32.totalorder %s105, %s107
      %p111 = scmp.eq.s32.totalorder %s31, 0
      %p112 = por %p110, %p111
      %p113 = scmp.ne.s32.totalorder %s105, %s107
      %p114 = scmp.eq.s32.totalorder %s36, 1
      %p115 = por %p113, %p114
      %p116 = scmp.ne.s32.totalorder %s107, %s108
      %p117 = scmp.eq.s32.totalorder %s36, 0
      %p118 = por %p116, %p117
      %p119 = scmp.ne.s32.totalorder %s107, %s108
      %p120 = scmp.eq.s32.totalorder %s37, 1
      %p121 = por %p119, %p120
      %p123 = scmp.ne.s32.totalorder %s108, %s122
      %p124 = scmp.eq.s32.totalorder %s37, 0
      %p125 = por %p123, %p124
      %s127 = sadd.s32 %s126, 1
      %p130 = scmp.eq.s32.totalorder %s31, 1
      %p131 = scmp.ne.s32.totalorder %s126, %s128
      %p132 = scmp.eq.s32.totalorder %s31, 0
      %p133 = por %p131, %p132
      %p134 = scmp.ne.s32.totalorder %s126, %s128
      %p135 = scmp.eq.s32.totalorder %s36, 1
      %p136 = por %p134, %p135
      %p137 = scmp.ne.s32.totalorder %s128, %s129
      %p138 = scmp.eq.s32.totalorder %s36, 0
      %p139 = por %p137, %p138
      %p140 = scmp.ne.s32.totalorder %s128, %s129
      %p141 = scmp.eq.s32.totalorder %s37, 1
      %p142 = por %p140, %p141
      %p144 = scmp.ne.s32.totalorder %s129, %s143
      %p145 = scmp.eq.s32.totalorder %s37, 0
      %p146 = por %p144, %p145
      %s148 = sadd.s32 %s147, 1
      %p151 = scmp.eq.s32.totalorder %s31, 1
      %p152 = scmp.ne.s32.totalorder %s147, %s149
      %p153 = scmp.eq.s32.totalorder %s31, 0
      %p154 = por %p152, %p153
      %p155 = scmp.ne.s32.totalorder %s147, %s149
      %p156 = scmp.eq.s32.totalorder %s36, 1
      %p157 = por %p155, %p156
      %p158 = scmp.ne.s32.totalorder %s149, %s150
      %p159 = scmp.eq.s32.totalorder %s36, 0
      %p160 = por %p158, %p159
      %p161 = scmp.ne.s32.totalorder %s149, %s150
      %p162 = scmp.eq.s32.totalorder %s37, 1
      %p163 = por %p161, %p162
      %p165 = scmp.ne.s32.totalorder %s150, %s164
      %p166 = scmp.eq.s32.totalorder %s37, 0
      %p167 = por %p165, %p166
      %s169 = sadd.s32 %s168, 1
      %p172 = scmp.eq.s32.totalorder %s31, 1
      %p173 = scmp.ne.s32.totalorder %s168, %s170
      %p174 = scmp.eq.s32.totalorder %s31, 0
      %p175 = por %p173, %p174
      %p176 = scmp.ne.s32.totalorder %s168, %s170
      %p177 = scmp.eq.s32.totalorder %s36, 1
      %p178 = por %p176, %p177
      %p179 = scmp.ne.s32.totalorder %s170, %s171
      %p180 = scmp.eq.s32.totalorder %s36, 0
      %p181 = por %p179, %p180
      %p182 = scmp.ne.s32.totalorder %s170, %s171
      %p183 = scmp.eq.s32.totalorder %s37, 1
      %p184 = por %p182, %p183
      %p186 = scmp.ne.s32.totalorder %s171, %s185
      %p187 = scmp.eq.s32.totalorder %s37, 0
      %p188 = por %p186, %p187
      %s190 = sadd.s32 %s189, 1
      %p193 = scmp.eq.s32.totalorder %s31, 1
      %p194 = scmp.ne.s32.totalorder %s189, %s191
      %p195 = scmp.eq.s32.totalorder %s31, 0
      %p196 = por %p194, %p195
      %p197 = scmp.ne.s32.totalorder %s189, %s191
      %p198 = scmp.eq.s32.totalorder %s36, 1
      %p199 = por %p197, %p198
      %p200 = scmp.ne.s32.totalorder %s191, %s192
      %p201 = scmp.eq.s32.totalorder %s36, 0
      %p202 = por %p200, %p201
      %p203 = scmp.ne.s32.totalorder %s191, %s192
      %p204 = scmp.eq.s32.totalorder %s37, 1
      %p205 = por %p203, %p204
      %p207 = scmp.ne.s32.totalorder %s192, %s206
      %p208 = scmp.eq.s32.totalorder %s37, 0
      %p209 = por %p207, %p208
      %s211 = sadd.s32 %s210, 1
      %p214 = scmp.eq.s32.totalorder %s31, 1
      %p215 = scmp.ne.s32.totalorder %s210, %s212
      %p216 = scmp.eq.s32.totalorder %s31, 0
      %p217 = por %p215, %p216
      %p218 = scmp.ne.s32.totalorder %s210, %s212
      %p219 = scmp.eq.s32.totalorder %s36, 1
      %p220 = por %p218, %p219
      %p221 = scmp.ne.s32.totalorder %s212, %s213
      %p222 = scmp.eq.s32.totalorder %s36, 0
      %p223 = por %p221, %p222
      %p224 = scmp.ne.s32.totalorder %s212, %s213
      %p225 = scmp.eq.s32.totalorder %s37, 1
      %p226 = por %p224, %p225
      %p228 = scmp.ne.s32.totalorder %s213, %s227
      %p229 = scmp.eq.s32.totalorder %s37, 0
      %p230 = por %p228, %p229
      %s232 = sadd.s32 %s231, 1
      %p235 = scmp.eq.s32.totalorder %s31, 1
      %p236 = scmp.ne.s32.totalorder %s231, %s233
      %p237 = scmp.eq.s32.totalorder %s31, 0
      %p238 = por %p236, %p237
      %p239 = scmp.ne.s32.totalorder %s231, %s233
      %p240 = scmp.eq.s32.totalorder %s36, 1
      %p241 = por %p239, %p240
      %p242 = scmp.ne.s32.totalorder %s233, %s234
      %p243 = scmp.eq.s32.totalorder %s36, 0
      %p244 = por %p242, %p243
      %p245 = scmp.ne.s32.totalorder %s233, %s234
      %p246 = scmp.eq.s32.totalorder %s37, 1
      %p247 = por %p245, %p246
      %p249 = scmp.ne.s32.totalorder %s234, %s248
      %p250 = scmp.eq.s32.totalorder %s37, 0
      %p251 = por %p249, %p250
      %s253 = sadd.s32 %s252, 1
      %p256 = scmp.eq.s32.totalorder %s31, 1
      %p257 = scmp.ne.s32.totalorder %s252, %s254
      %p258 = scmp.eq.s32.totalorder %s31, 0
      %p259 = por %p257, %p258
      %p260 = scmp.ne.s32.totalorder %s252, %s254
      %p261 = scmp.eq.s32.totalorder %s36, 1
      %p262 = por %p260, %p261
      %p263 = scmp.ne.s32.totalorder %s254, %s255
      %p264 = scmp.eq.s32.totalorder %s36, 0
      %p265 = por %p263, %p264
      %p266 = scmp.ne.s32.totalorder %s254, %s255
      %p267 = scmp.eq.s32.totalorder %s37, 1
      %p268 = por %p266, %p267
      %p270 = scmp.ne.s32.totalorder %s255, %s269
      %p271 = scmp.eq.s32.totalorder %s37, 0
      %p272 = por %p270, %p271
      %s274 = sadd.s32 %s273, 1
      %p277 = scmp.eq.s32.totalorder %s31, 1
      %p278 = scmp.ne.s32.totalorder %s273, %s275
      %p279 = scmp.eq.s32.totalorder %s31, 0
      %p280 = por %p278, %p279
      %p281 = scmp.ne.s32.totalorder %s273, %s275
      %p282 = scmp.eq.s32.totalorder %s36, 1
      %p283 = por %p281, %p282
      %p284 = scmp.ne.s32.totalorder %s275, %s276
      %p285 = scmp.eq.s32.totalorder %s36, 0
      %p286 = por %p284, %p285
      %p287 = scmp.ne.s32.totalorder %s275, %s276
      %p288 = scmp.eq.s32.totalorder %s37, 1
      %p289 = por %p287, %p288
      %p291 = scmp.ne.s32.totalorder %s276, %s290
      %p292 = scmp.eq.s32.totalorder %s37, 0
      %p293 = por %p291, %p292
      %s295 = sadd.s32 %s294, 1
      %p298 = scmp.eq.s32.totalorder %s31, 1
      %p299 = scmp.ne.s32.totalorder %s294, %s296
      %p300 = scmp.eq.s32.totalorder %s31, 0
      %p301 = por %p299, %p300
      %p302 = scmp.ne.s32.totalorder %s294, %s296
      %p303 = scmp.eq.s32.totalorder %s36, 1
      %p304 = por %p302, %p303
      %p305 = scmp.ne.s32.totalorder %s296, %s297
      %p306 = scmp.eq.s32.totalorder %s36, 0
      %p307 = por %p305, %p306
      %p308 = scmp.ne.s32.totalorder %s296, %s297
      %p309 = scmp.eq.s32.totalorder %s37, 1
      %p310 = por %p308, %p309
      %p312 = scmp.ne.s32.totalorder %s297, %s311
      %p313 = scmp.eq.s32.totalorder %s37, 0
      %p314 = por %p312, %p313
      %s316 = sadd.s32 %s315, 1
      %p319 = scmp.eq.s32.totalorder %s31, 1
      %p320 = scmp.ne.s32.totalorder %s315, %s317
      %p321 = scmp.eq.s32.totalorder %s31, 0
      %p322 = por %p320, %p321
      %p323 = scmp.ne.s32.totalorder %s315, %s317
      %p324 = scmp.eq.s32.totalorder %s36, 1
      %p325 = por %p323, %p324
      %p326 = scmp.ne.s32.totalorder %s317, %s318
      %p327 = scmp.eq.s32.totalorder %s36, 0
      %p328 = por %p326, %p327
      %p329 = scmp.ne.s32.totalorder %s317, %s318
      %p330 = scmp.eq.s32.totalorder %s37, 1
      %p331 = por %p329, %p330
      %p333 = scmp.ne.s32.totalorder %s318, %s332
      %p334 = scmp.eq.s32.totalorder %s37, 0
      %p335 = por %p333, %p334
      %s337 = sadd.s32 %s336, 1
      %p340 = scmp.eq.s32.totalorder %s31, 1
      %p341 = scmp.ne.s32.totalorder %s336, %s338
      %p342 = scmp.eq.s32.totalorder %s31, 0
      %p343 = por %p341, %p342
      %p344 = scmp.ne.s32.totalorder %s336, %s338
      %p345 = scmp.eq.s32.totalorder %s36, 1
      %p346 = por %p344, %p345
      %p347 = scmp.ne.s32.totalorder %s338, %s339
      %p348 = scmp.eq.s32.totalorder %s36, 0
      %p349 = por %p347, %p348
      %p350 = scmp.ne.s32.totalorder %s338, %s339
      %p351 = scmp.eq.s32.totalorder %s37, 1
      %p352 = por %p350, %p351
      %p354 = scmp.ne.s32.totalorder %s339, %s353
      %p355 = scmp.eq.s32.totalorder %s37, 0
      %p356 = por %p354, %p355
      %s358 = sadd.s32 %s357, 1
      %p361 = scmp.eq.s32.totalorder %s31, 1
      %p362 = scmp.ne.s32.totalorder %s357, %s359
      %p363 = scmp.eq.s32.totalorder %s31, 0
      %p364 = por %p362, %p363
      %p365 = scmp.ne.s32.totalorder %s357, %s359
      %p366 = scmp.eq.s32.totalorder %s36, 1
      %p367 = por %p365, %p366
      %p368 = scmp.ne.s32.totalorder %s359, %s360
      %p369 = scmp.eq.s32.totalorder %s36, 0
      %p370 = por %p368, %p369
      %p371 = scmp.ne.s32.totalorder %s359, %s360
      %p372 = scmp.eq.s32.totalorder %s37, 1
      %p373 = por %p371, %p372
      %p375 = scmp.ne.s32.totalorder %s360, %s374
      %p376 = scmp.eq.s32.totalorder %s37, 0
      %p377 = por %p375, %p376
      %s379 = sadd.s32 %s378, 1
      %p382 = scmp.eq.s32.totalorder %s31, 1
      %p383 = scmp.ne.s32.totalorder %s378, %s380
      %p384 = scmp.eq.s32.totalorder %s31, 0
      %p385 = por %p383, %p384
      %p386 = scmp.ne.s32.totalorder %s378, %s380
      %p387 = scmp.eq.s32.totalorder %s36, 1
      %p388 = por %p386, %p387
      %p389 = scmp.ne.s32.totalorder %s380, %s381
      %p390 = scmp.eq.s32.totalorder %s36, 0
      %p391 = por %p389, %p390
      %p392 = scmp.ne.s32.totalorder %s380, %s381
      %p393 = scmp.eq.s32.totalorder %s37, 1
      %p394 = por %p392, %p393
      %p396 = scmp.ne.s32.totalorder %s381, %s395
      %p397 = scmp.eq.s32.totalorder %s37, 0
      %p398 = por %p396, %p397
      %s400 = sadd.s32 %s399, 1
      %p403 = scmp.eq.s32.totalorder %s31, 1
      %p404 = scmp.ne.s32.totalorder %s399, %s401
      %p405 = scmp.eq.s32.totalorder %s31, 0
      %p406 = por %p404, %p405
      %p407 = scmp.ne.s32.totalorder %s399, %s401
      %p408 = scmp.eq.s32.totalorder %s36, 1
      %p409 = por %p407, %p408
      %p410 = scmp.ne.s32.totalorder %s401, %s402
      %p411 = scmp.eq.s32.totalorder %s36, 0
      %p412 = por %p410, %p411
      %p413 = scmp.ne.s32.totalorder %s401, %s402
      %p414 = scmp.eq.s32.totalorder %s37, 1
      %p415 = por %p413, %p414
      %p417 = scmp.ne.s32.totalorder %s402, %s416
      %p418 = scmp.eq.s32.totalorder %s37, 0
      %p419 = por %p417, %p418
      %s421 = sadd.s32 %s420, 1
      %p424 = scmp.eq.s32.totalorder %s31, 1
      %p425 = scmp.ne.s32.totalorder %s420, %s422
      %p426 = scmp.eq.s32.totalorder %s31, 0
      %p427 = por %p425, %p426
      %p428 = scmp.ne.s32.totalorder %s420, %s422
      %p429 = scmp.eq.s32.totalorder %s36, 1
      %p430 = por %p428, %p429
      %p431 = scmp.ne.s32.totalorder %s422, %s423
      %p432 = scmp.eq.s32.totalorder %s36, 0
      %p433 = por %p431, %p432
      %p434 = scmp.ne.s32.totalorder %s422, %s423
      %p435 = scmp.eq.s32.totalorder %s37, 1
      %p436 = por %p434, %p435
      %p438 = scmp.ne.s32.totalorder %s423, %s437
      %p439 = scmp.eq.s32.totalorder %s37, 0
      %p440 = por %p438, %p439
      %s442 = sadd.s32 %s441, 1
      %p445 = scmp.eq.s32.totalorder %s31, 1
      %p446 = scmp.ne.s32.totalorder %s441, %s443
      %p447 = scmp.eq.s32.totalorder %s31, 0
      %p448 = por %p446, %p447
      %p449 = scmp.ne.s32.totalorder %s441, %s443
      %p450 = scmp.eq.s32.totalorder %s36, 1
      %p451 = por %p449, %p450
      %p452 = scmp.ne.s32.totalorder %s443, %s444
      %p453 = scmp.eq.s32.totalorder %s36, 0
      %p454 = por %p452, %p453
      %p455 = scmp.ne.s32.totalorder %s443, %s444
      %p456 = scmp.eq.s32.totalorder %s37, 1
      %p457 = por %p455, %p456
      %p459 = scmp.ne.s32.totalorder %s444, %s458
      %p460 = scmp.eq.s32.totalorder %s37, 0
      %p461 = por %p459, %p460
      %s463 = sadd.s32 %s462, 1
      %p466 = scmp.eq.s32.totalorder %s31, 1
      %p467 = scmp.ne.s32.totalorder %s462, %s464
      %p468 = scmp.eq.s32.totalorder %s31, 0
      %p469 = por %p467, %p468
      %p470 = scmp.ne.s32.totalorder %s462, %s464
      %p471 = scmp.eq.s32.totalorder %s36, 1
      %p472 = por %p470, %p471
      %p473 = scmp.ne.s32.totalorder %s464, %s465
      %p474 = scmp.eq.s32.totalorder %s36, 0
      %p475 = por %p473, %p474
      %p476 = scmp.ne.s32.totalorder %s464, %s465
      %p477 = scmp.eq.s32.totalorder %s37, 1
      %p478 = por %p476, %p477
      %p480 = scmp.ne.s32.totalorder %s465, %s479
      %p481 = scmp.eq.s32.totalorder %s37, 0
      %p482 = por %p480, %p481
      %s484 = sadd.s32 %s483, 1
      %p487 = scmp.eq.s32.totalorder %s31, 1
      %p488 = scmp.ne.s32.totalorder %s483, %s485
      %p489 = scmp.eq.s32.totalorder %s31, 0
      %p490 = por %p488, %p489
      %p491 = scmp.ne.s32.totalorder %s483, %s485
      %p492 = scmp.eq.s32.totalorder %s36, 1
      %p493 = por %p491, %p492
      %p494 = scmp.ne.s32.totalorder %s485, %s486
      %p495 = scmp.eq.s32.totalorder %s36, 0
      %p496 = por %p494, %p495
      %p497 = scmp.ne.s32.totalorder %s485, %s486
      %p498 = scmp.eq.s32.totalorder %s37, 1
      %p499 = por %p497, %p498
      %p501 = scmp.ne.s32.totalorder %s486, %s500
      %p502 = scmp.eq.s32.totalorder %s37, 0
      %p503 = por %p501, %p502
      %s505 = sadd.s32 %s504, 1
      %p508 = scmp.eq.s32.totalorder %s31, 1
      %p509 = scmp.ne.s32.totalorder %s504, %s506
      %p510 = scmp.eq.s32.totalorder %s31, 0
      %p511 = por %p509, %p510
      %p512 = scmp.ne.s32.totalorder %s504, %s506
      %p513 = scmp.eq.s32.totalorder %s36, 1
      %p514 = por %p512, %p513
      %p515 = scmp.ne.s32.totalorder %s506, %s507
      %p516 = scmp.eq.s32.totalorder %s36, 0
      %p517 = por %p515, %p516
      %p518 = scmp.ne.s32.totalorder %s506, %s507
      %p519 = scmp.eq.s32.totalorder %s37, 1
      %p520 = por %p518, %p519
      %p522 = scmp.ne.s32.totalorder %s507, %s521
      %p523 = scmp.eq.s32.totalorder %s37, 0
      %p524 = por %p522, %p523
      %s525 = ssub.s32 %s38, %s50
      %s526 = ssub.s32 %s39, %s46
      %s527 = sor.u32 %s525, %s526
      %p528 = scmp.eq.s32.totalorder %s527, 0
      %s530 = sadd.s32 %s529, 1
      %s531 = scalar_select %p528, %s529, %s530
      %p534 = pneg %p528
      %p535 = scmp.eq.s32.totalorder %s31, 1
      %p536 = por %p534, %p535
      %p537 = scmp.ne.s32.totalorder %s529, %s532
      %p538 = scmp.eq.s32.totalorder %s31, 0
      %p539 = por %p537, %p538
      %p540 = scmp.ne.s32.totalorder %s529, %s532
      %p541 = scmp.eq.s32.totalorder %s36, 1
      %p542 = por %p540, %p541
      %p543 = scmp.ne.s32.totalorder %s532, %s533
      %p544 = scmp.eq.s32.totalorder %s36, 0
      %p545 = por %p543, %p544
      %p546 = scmp.ne.s32.totalorder %s532, %s533
      %p547 = scmp.eq.s32.totalorder %s37, 1
      %p548 = por %p546, %p547
      %p550 = scmp.ne.s32.totalorder %s533, %s549
      %p551 = scmp.eq.s32.totalorder %s37, 0
      %p552 = por %p550, %p551
      %p553 = scmp.le.s32.totalorder 1, %s31
      %p554 = scmp.lt.s32.totalorder %s31, 3
      %p555 = pnand %p553, %p554
      %p556 = pneg %p555
      // Predicated region
      $region9: #{tpu_custom_call.1} parent=5 // pred_check
        _
      $region10: #{tpu_custom_call.1} parent=5 // pred_check_branch
        %558 = sbr.rel (%p555) target = $region12
      $region11: #{tpu_custom_call.1} parent=5 // pred_region
        %s559 = ssub.s32 %s31, 1
        // Predicated region
        $region13: #{tpu_custom_call.1} parent=11 // pred_check
          %p560 = pneg %p118
        $region14: #{tpu_custom_call.1} parent=11 // pred_check_branch
          %562 = sbr.rel (%p560) target = $region16
        $region15: #{tpu_custom_call.1} parent=11 // pred_region
          _
        $region16: #{tpu_custom_call.1} parent=11 // pred_fallthru
          _
        // Predicated region
        $region17: #{tpu_custom_call.1} parent=11 // pred_check
          %p563 = pneg %p139
        $region18: #{tpu_custom_call.1} parent=11 // pred_check_branch
          %565 = sbr.rel (%p563) target = $region20
        $region19: #{tpu_custom_call.1} parent=11 // pred_region
          _
        $region20: #{tpu_custom_call.1} parent=11 // pred_fallthru
          _
        // Predicated region
        $region21: #{tpu_custom_call.1} parent=11 // pred_check
          %p566 = pneg %p160
        $region22: #{tpu_custom_call.1} parent=11 // pred_check_branch
          %568 = sbr.rel (%p566) target = $region24
        $region23: #{tpu_custom_call.1} parent=11 // pred_region
          _
        $region24: #{tpu_custom_call.1} parent=11 // pred_fallthru
          _
        // Predicated region
        $region25: #{tpu_custom_call.1} parent=11 // pred_check
          %p569 = pneg %p181
        $region26: #{tpu_custom_call.1} parent=11 // pred_check_branch
          %571 = sbr.rel (%p569) target = $region28
        $region27: #{tpu_custom_call.1} parent=11 // pred_region
          _
        $region28: #{tpu_custom_call.1} parent=11 // pred_fallthru
          _
        // Predicated region
        $region29: #{tpu_custom_call.1} parent=11 // pred_check
          %p572 = pneg %p202
        $region30: #{tpu_custom_call.1} parent=11 // pred_check_branch
          %574 = sbr.rel (%p572) target = $region32
        $region31: #{tpu_custom_call.1} parent=11 // pred_region
          _
        $region32: #{tpu_custom_call.1} parent=11 // pred_fallthru
          _
        // Predicated region
        $region33: #{tpu_custom_call.1} parent=11 // pred_check
          %p575 = pneg %p223
        $region34: #{tpu_custom_call.1} parent=11 // pred_check_branch
          %577 = sbr.rel (%p575) target = $region36
        $region35: #{tpu_custom_call.1} parent=11 // pred_region
          _
        $region36: #{tpu_custom_call.1} parent=11 // pred_fallthru
          _
        // Predicated region
        $region37: #{tpu_custom_call.1} parent=11 // pred_check
          %p578 = pneg %p244
        $region38: #{tpu_custom_call.1} parent=11 // pred_check_branch
          %580 = sbr.rel (%p578) target = $region40
        $region39: #{tpu_custom_call.1} parent=11 // pred_region
          _
        $region40: #{tpu_custom_call.1} parent=11 // pred_fallthru
          _
        // Predicated region
        $region41: #{tpu_custom_call.1} parent=11 // pred_check
          %p581 = pneg %p265
        $region42: #{tpu_custom_call.1} parent=11 // pred_check_branch
          %583 = sbr.rel (%p581) target = $region44
        $region43: #{tpu_custom_call.1} parent=11 // pred_region
          _
        $region44: #{tpu_custom_call.1} parent=11 // pred_fallthru
          _
        // Predicated region
        $region45: #{tpu_custom_call.1} parent=11 // pred_check
          %p584 = pneg %p286
        $region46: #{tpu_custom_call.1} parent=11 // pred_check_branch
          %586 = sbr.rel (%p584) target = $region48
        $region47: #{tpu_custom_call.1} parent=11 // pred_region
          _
        $region48: #{tpu_custom_call.1} parent=11 // pred_fallthru
          _
        // Predicated region
        $region49: #{tpu_custom_call.1} parent=11 // pred_check
          %p587 = pneg %p307
        $region50: #{tpu_custom_call.1} parent=11 // pred_check_branch
          %589 = sbr.rel (%p587) target = $region52
        $region51: #{tpu_custom_call.1} parent=11 // pred_region
          _
        $region52: #{tpu_custom_call.1} parent=11 // pred_fallthru
          _
        // Predicated region
        $region53: #{tpu_custom_call.1} parent=11 // pred_check
          %p590 = pneg %p328
        $region54: #{tpu_custom_call.1} parent=11 // pred_check_branch
          %592 = sbr.rel (%p590) target = $region56
        $region55: #{tpu_custom_call.1} parent=11 // pred_region
          _
        $region56: #{tpu_custom_call.1} parent=11 // pred_fallthru
          _
        // Predicated region
        $region57: #{tpu_custom_call.1} parent=11 // pred_check
          %p593 = pneg %p349
        $region58: #{tpu_custom_call.1} parent=11 // pred_check_branch
          %595 = sbr.rel (%p593) target = $region60
        $region59: #{tpu_custom_call.1} parent=11 // pred_region
          _
        $region60: #{tpu_custom_call.1} parent=11 // pred_fallthru
          _
        // Predicated region
        $region61: #{tpu_custom_call.1} parent=11 // pred_check
          %p596 = pneg %p370
        $region62: #{tpu_custom_call.1} parent=11 // pred_check_branch
          %598 = sbr.rel (%p596) target = $region64
        $region63: #{tpu_custom_call.1} parent=11 // pred_region
          _
        $region64: #{tpu_custom_call.1} parent=11 // pred_fallthru
          _
        // Predicated region
        $region65: #{tpu_custom_call.1} parent=11 // pred_check
          %p599 = pneg %p391
        $region66: #{tpu_custom_call.1} parent=11 // pred_check_branch
          %601 = sbr.rel (%p599) target = $region68
        $region67: #{tpu_custom_call.1} parent=11 // pred_region
          _
        $region68: #{tpu_custom_call.1} parent=11 // pred_fallthru
          _
        // Predicated region
        $region69: #{tpu_custom_call.1} parent=11 // pred_check
          %p602 = pneg %p412
        $region70: #{tpu_custom_call.1} parent=11 // pred_check_branch
          %604 = sbr.rel (%p602) target = $region72
        $region71: #{tpu_custom_call.1} parent=11 // pred_region
          _
        $region72: #{tpu_custom_call.1} parent=11 // pred_fallthru
          _
        // Predicated region
        $region73: #{tpu_custom_call.1} parent=11 // pred_check
          %p605 = pneg %p433
        $region74: #{tpu_custom_call.1} parent=11 // pred_check_branch
          %607 = sbr.rel (%p605) target = $region76
        $region75: #{tpu_custom_call.1} parent=11 // pred_region
          _
        $region76: #{tpu_custom_call.1} parent=11 // pred_fallthru
          _
        // Predicated region
        $region77: #{tpu_custom_call.1} parent=11 // pred_check
          %p608 = pneg %p454
        $region78: #{tpu_custom_call.1} parent=11 // pred_check_branch
          %610 = sbr.rel (%p608) target = $region80
        $region79: #{tpu_custom_call.1} parent=11 // pred_region
          _
        $region80: #{tpu_custom_call.1} parent=11 // pred_fallthru
          _
        // Predicated region
        $region81: #{tpu_custom_call.1} parent=11 // pred_check
          %p611 = pneg %p475
        $region82: #{tpu_custom_call.1} parent=11 // pred_check_branch
          %613 = sbr.rel (%p611) target = $region84
        $region83: #{tpu_custom_call.1} parent=11 // pred_region
          _
        $region84: #{tpu_custom_call.1} parent=11 // pred_fallthru
          _
        // Predicated region
        $region85: #{tpu_custom_call.1} parent=11 // pred_check
          %p614 = pneg %p496
        $region86: #{tpu_custom_call.1} parent=11 // pred_check_branch
          %616 = sbr.rel (%p614) target = $region88
        $region87: #{tpu_custom_call.1} parent=11 // pred_region
          _
        $region88: #{tpu_custom_call.1} parent=11 // pred_fallthru
          _
        // Predicated region
        $region89: #{tpu_custom_call.1} parent=11 // pred_check
          %p617 = pneg %p517
        $region90: #{tpu_custom_call.1} parent=11 // pred_check_branch
          %619 = sbr.rel (%p617) target = $region92
        $region91: #{tpu_custom_call.1} parent=11 // pred_region
          _
        $region92: #{tpu_custom_call.1} parent=11 // pred_fallthru
          _
      $region12: #{tpu_custom_call.1} parent=5 // pred_fallthru
        _
      %p620 = scmp.lt.s32.totalorder %s31, 2
      // Predicated region
      $region93: #{tpu_custom_call.1} parent=5 // pred_check
        %p621 = pneg %p620
      $region94: #{tpu_custom_call.1} parent=5 // pred_check_branch
        %623 = sbr.rel (%p621) target = $region96
      $region95: #{tpu_custom_call.1} parent=5 // pred_region
        // Predicated region
        $region97: #{tpu_custom_call.1} parent=95 // pred_check
          %p624 = pneg %p65
        $region98: #{tpu_custom_call.1} parent=95 // pred_check_branch
          %626 = sbr.rel (%p624) target = $region100
        $region99: #{tpu_custom_call.1} parent=95 // pred_region
          %p627 = scmp.lt.s32.totalorder %s38, 1
          %s628 = scalar_select %p627, %s38, 1
          %p629 = scmp.lt.s32.totalorder %s39, 0
          %s630 = scalar_select %p629, %s39, 0
          %s631 = sadd.s32 %s630, %s628
          %s632 = smul.addr %s631, 8
          %s633 = scalar_lea.vmem %s0, %s632
        $region100: #{tpu_custom_call.1} parent=95 // pred_fallthru
          _
        // Predicated region
        $region101: #{tpu_custom_call.1} parent=95 // pred_check
          %p634 = pneg %p91
        $region102: #{tpu_custom_call.1} parent=95 // pred_check_branch
          %636 = sbr.rel (%p634) target = $region104
        $region103: #{tpu_custom_call.1} parent=95 // pred_region
          %p637 = scmp.lt.s32.totalorder %s38, 1
          %s638 = scalar_select %p637, %s38, 1
          %s639 = smul.addr %s638, 8
          %s640 = scalar_lea.vmem %s1, %s639
        $region104: #{tpu_custom_call.1} parent=95 // pred_fallthru
          _
      $region96: #{tpu_custom_call.1} parent=5 // pred_fallthru
        _
      %p641 = scmp.le.s32.totalorder 1, %s31
      %p642 = scmp.lt.s32.totalorder %s31, 3
      %p643 = pnand %p641, %p642
      %p644 = pneg %p643
      // Predicated region
      $region105: #{tpu_custom_call.1} parent=5 // pred_check
        _
      $region106: #{tpu_custom_call.1} parent=5 // pred_check_branch
        %646 = sbr.rel (%p643) target = $region108
      $region107: #{tpu_custom_call.1} parent=5 // pred_region
        %s647 = ssub.s32 %s31, 1
        %p648 = scmp.lt.s32.totalorder %s40, 1
        %s649 = scalar_select %p648, %s40, 1
        %p650 = scmp.lt.s32.totalorder %s41, 0
        %s651 = scalar_select %p650, %s41, 0
        %s652 = sadd.s32 %s651, %s649
        %s653 = smul.addr %s652, 8
        %s654 = scalar_lea.vmem %s0, %s653
        %p655 = pneg %p71
        %p656 = pneg %p68
        %p657 = scmp.lt.s32.totalorder %s40, 1
        %s658 = scalar_select %p657, %s40, 1
        %s659 = smul.addr %s658, 8
        %s660 = scalar_lea.vmem %s1, %s659
        %p661 = pneg %p97
        %p662 = pneg %p94
        %p663 = pneg %p118
        %p664 = pneg %p115
        %p665 = pneg %p139
        %p666 = pneg %p136
        %p667 = pneg %p160
        %p668 = pneg %p157
        %p669 = pneg %p181
        %p670 = pneg %p178
        %p671 = pneg %p202
        %p672 = pneg %p199
        %p673 = pneg %p223
        %p674 = pneg %p220
        %p675 = pneg %p244
        %p676 = pneg %p241
        %p677 = pneg %p265
        %p678 = pneg %p262
        %p679 = pneg %p286
        %p680 = pneg %p283
        %p681 = pneg %p307
        %p682 = pneg %p304
        %p683 = pneg %p328
        %p684 = pneg %p325
        %p685 = pneg %p349
        %p686 = pneg %p346
        %p687 = pneg %p370
        %p688 = pneg %p367
        %p689 = pneg %p391
        %p690 = pneg %p388
        %p691 = pneg %p412
        %p692 = pneg %p409
        %p693 = pneg %p433
        %p694 = pneg %p430
        %p695 = pneg %p454
        %p696 = pneg %p451
        %p697 = pneg %p475
        %p698 = pneg %p472
        %p699 = pneg %p496
        %p700 = pneg %p493
        %p701 = pneg %p517
        %p702 = pneg %p514
        %p703 = pneg %p545
        %p704 = pneg %p542
        %s705 = sand.u32 %s532, 1
        %s706 = scalar_lea.sflag [#allocation3], %s705
        %s707 = sand.u32 %s532, 1
        %s708 = smul.addr %s707, 8
        %s709 = scalar_lea.vmem [#allocation2], %s708
        %p710 = scmp.lt.s32.totalorder %s40, 1
        %s711 = scalar_select %p710, %s40, 1
        %p712 = scmp.lt.s32.totalorder %s41, 0
        %s713 = scalar_select %p712, %s41, 0
        %s714 = sadd.s32 %s713, %s711
        %s715 = smul.addr %s714, 8
        %s716 = scalar_lea.vmem %s0, %s715
        %p717 = scmp.lt.s32.totalorder %s40, 1
        %s718 = scalar_select %p717, %s40, 1
        %s719 = smul.addr %s718, 8
        %s720 = scalar_lea.vmem %s1, %s719
        %v722 = vld [vmem:[%s716] sm:$0xff]
        %v723 = vld [vmem:[%s720] sm:$0xff]
        %vm724 = vcmask 261120
        %v725 = vsel %vm724, %v722, 0.0
        %726 = vadd.xlane.f32.xlu0 %v725
        %v727 = vpop.xlane.xlu0 %726
        %v728 = vrcp.pop 32.0
        %v729 = vmul.f32 %v727, %v728
        %v730 = vsub.f32 %v722, %v729
        %v731 = vmul.f32 %v730, %v730
        %v732 = vsel %vm724, %v731, 0.0
        %733 = vadd.xlane.f32.xlu0 %v732
        %v734 = vpop.xlane.xlu0 %733
        %v735 = vmul.f32 %v734, %v728
        %v736 = vadd.f32 %v735, 1e-05
        %v737 = vrsqrt.pop %v736
        %v738 = vmul.f32 %v730, %v737
        %v739 = vld [vmem:[%s2] sm:$0x1]
        %v741 = vlaneseq
        %v742 = vshrl.u32 %v741, 7
        %v743 = vsub.s32 0, %v742
        %v744 = vrot.slane %v739, %v743
        %v746 = vmul.f32 %v738, %v744
        %v747 = vld [vmem:[%s3] sm:$0x1]
        %v749 = vlaneseq
        %v750 = vshrl.u32 %v749, 7
        %v751 = vsub.s32 0, %v750
        %v752 = vrot.slane %v747, %v751
        %v754 = vadd.f32 %v746, %v752
        %v755 = vpack.c.bf16 %v754, %v754
        %v756 = vsel %vm724, %v723, 0.0
        %757 = vadd.xlane.f32.xlu0 %v756
        %v758 = vpop.xlane.xlu0 %757
        %v759 = vmul.f32 %v758, %v728
        %v760 = vsub.f32 %v723, %v759
        %v761 = vmul.f32 %v760, %v760
        %v762 = vsel %vm724, %v761, 0.0
        %763 = vadd.xlane.f32.xlu0 %v762
        %v764 = vpop.xlane.xlu0 %763
        %v765 = vmul.f32 %v764, %v728
        %v766 = vadd.f32 %v765, 1e-05
        %v767 = vrsqrt.pop %v766
        %v768 = vmul.f32 %v760, %v767
        %v769 = vmul.f32 %v768, %v744
        %v770 = vadd.f32 %v769, %v752
        %v771 = vpack.c.bf16 %v770, %v770
        %v772 = vld [vmem:[%s4] sm:$0xf]
        %v773 = vld [vmem:[%s4 + $0x4] sm:$0xf]
        %v774 = vld [vmem:[%s4 + $0x8] sm:$0xf]
        %v775 = vld [vmem:[%s4 + $0xc] sm:$0xf]
        %v776 = vld [vmem:[%s4 + $0x10] sm:$0xf]
        %v777 = vld [vmem:[%s4 + $0x14] sm:$0xf]
        %v778 = vld [vmem:[%s4 + $0x18] sm:$0xf]
        %v779 = vld [vmem:[%s4 + $0x1c] sm:$0xf]
        %v780 = vld [vmem:[%s4 + $0x20] sm:$0xf]
        %v781 = vld [vmem:[%s4 + $0x24] sm:$0xf]
        %v782 = vld [vmem:[%s4 + $0x28] sm:$0xf]
        %v783 = vld [vmem:[%s4 + $0x2c] sm:$0xf]
        %v784 = vld [vmem:[%s4 + $0x30] sm:$0xf]
        %v785 = vld [vmem:[%s4 + $0x34] sm:$0xf]
        %v786 = vld [vmem:[%s4 + $0x38] sm:$0xf]
        %v787 = vld [vmem:[%s4 + $0x3c] sm:$0xf]
        %v788 = vld [vmem:[%s5] sm:$0x1]
        %v789 = vld [vmem:[%s5 + $0x1] sm:$0x1]
        %v790 = vld [vmem:[%s5 + $0x2] sm:$0x1]
        %v791 = vld [vmem:[%s5 + $0x3] sm:$0x1]
        %v796 = vlaneseq
        %v797 = vshrl.u32 %v796, 7
        %v798 = vsub.s32 0, %v797
        %v799 = vrot.slane %v788, %v798
        %v800 = vlaneseq
        %v801 = vshrl.u32 %v800, 7
        %v802 = vsub.s32 0, %v801
        %v803 = vrot.slane %v789, %v802
        %v804 = vlaneseq
        %v805 = vshrl.u32 %v804, 7
        %v806 = vsub.s32 0, %v805
        %v807 = vrot.slane %v790, %v806
        %v808 = vlaneseq
        %v809 = vshrl.u32 %v808, 7
        %v810 = vsub.s32 0, %v809
        %v811 = vrot.slane %v791, %v810
        %v820 = vunpack.c.l.b16 %v772
        %v821 = vunpack.c.l.b16 %v773
        %v822 = vunpack.c.l.b16 %v774
        %v823 = vunpack.c.l.b16 %v775
        %v824 = vpack.c.b16 %v821, %v820
        %v825 = vpack.c.b16 %v823, %v822
        %v829 = vsel %vm724, %v755, 0
        %831 = vmatprep.subr.bf16.mxu0 0
        %832 = vmatpush1.bf16.msra.mxu0 0
        %833 = vmatprep.subr.bf16.mxu0 0
        %834 = vmatpush1.bf16.msra.mxu0 0
        %835 = vmatprep.subr.bf16.mxu0 0
        %836 = vmatpush1.bf16.msra.mxu0 0
        %837 = vmatprep.subr.bf16.mxu0 0
        %838 = vmatpush1.bf16.msra.mxu0 0
        %839 = vmatprep.subr.bf16.mxu0 0
        %840 = vmatpush1.bf16.msra.mxu0 0
        %841 = vmatprep.subr.bf16.mxu0 0
        %842 = vmatpush1.bf16.msra.mxu0 0
        %843 = vmatprep.subr.bf16.mxu0 0
        %844 = vmatpush1.bf16.msra.mxu0 %v825
        %845 = vmatprep.subr.bf16.mxu0 0
        %846 = vmatpush1.bf16.msra.mxu0 %v824
        %847 = vmatprep.subr.bf16.mxu0 0
        %848 = vmatpush2.bf16.msra.mxu0 0
        %849 = vmatprep.subr.bf16.mxu0 0
        %850 = vmatpush2.bf16.msra.mxu0 0
        %851 = vmatprep.subr.bf16.mxu0 0
        %852 = vmatpush2.bf16.msra.mxu0 0
        %853 = vmatprep.subr.bf16.mxu0 0
        %854 = vmatpush2.bf16.msra.mxu0 0
        %855 = vmatprep.subr.bf16.mxu0 0
        %856 = vmatpush2.bf16.msra.mxu0 0
        %857 = vmatprep.subr.bf16.mxu0 0
        %858 = vmatpush2.bf16.msra.mxu0 0
        %859 = vmatprep.subr.bf16.mxu0 0
        %860 = vmatpush2.bf16.msra.mxu0 0
        %861 = vmatprep.subr.bf16.mxu0 0
        %862 = vmatpush2.bf16.msra.mxu0 0
        %863 = vmatprep.mubr.bf16.mxu0 0
        %864 = vmatmul.mubr.bf16.gmra.mxu0 %v829
        %v865 = vpop.f32.mrf.mxu0
        %v866 = vadd.f32 %v799, %v865
        %v867 = vpop.f32.mrf.mxu0
        %v868 = vpop.f32.mrf.mxu0
        %v869 = vpop.f32.mrf.mxu0
        %870 = vdwg.mxu0
        %v875 = vunpack.c.l.b16 %v776
        %v876 = vunpack.c.l.b16 %v777
        %v877 = vunpack.c.l.b16 %v778
        %v878 = vunpack.c.l.b16 %v779
        %v879 = vpack.c.b16 %v876, %v875
        %v880 = vpack.c.b16 %v878, %v877
        %883 = vmatprep.subr.bf16.mxu0 0
        %884 = vmatpush1.bf16.msra.mxu0 0
        %885 = vmatprep.subr.bf16.mxu0 0
        %886 = vmatpush1.bf16.msra.mxu0 0
        %887 = vmatprep.subr.bf16.mxu0 0
        %888 = vmatpush1.bf16.msra.mxu0 0
        %889 = vmatprep.subr.bf16.mxu0 0
        %890 = vmatpush1.bf16.msra.mxu0 0
        %891 = vmatprep.subr.bf16.mxu0 0
        %892 = vmatpush1.bf16.msra.mxu0 0
        %893 = vmatprep.subr.bf16.mxu0 0
        %894 = vmatpush1.bf16.msra.mxu0 0
        %895 = vmatprep.subr.bf16.mxu0 0
        %896 = vmatpush1.bf16.msra.mxu0 %v880
        %897 = vmatprep.subr.bf16.mxu0 0
        %898 = vmatpush1.bf16.msra.mxu0 %v879
        %899 = vmatprep.subr.bf16.mxu0 0
        %900 = vmatpush2.bf16.msra.mxu0 0
        %901 = vmatprep.subr.bf16.mxu0 0
        %902 = vmatpush2.bf16.msra.mxu0 0
        %903 = vmatprep.subr.bf16.mxu0 0
        %904 = vmatpush2.bf16.msra.mxu0 0
        %905 = vmatprep.subr.bf16.mxu0 0
        %906 = vmatpush2.bf16.msra.mxu0 0
        %907 = vmatprep.subr.bf16.mxu0 0
        %908 = vmatpush2.bf16.msra.mxu0 0
        %909 = vmatprep.subr.bf16.mxu0 0
        %910 = vmatpush2.bf16.msra.mxu0 0
        %911 = vmatprep.subr.bf16.mxu0 0
        %912 = vmatpush2.bf16.msra.mxu0 0
        %913 = vmatprep.subr.bf16.mxu0 0
        %914 = vmatpush2.bf16.msra.mxu0 0
        %915 = vmatprep.mubr.bf16.mxu0 0
        %916 = vmatmul.mubr.bf16.gmra.mxu0 %v829
        %v917 = vpop.f32.mrf.mxu0
        %v918 = vadd.f32 %v803, %v917
        %v919 = vpop.f32.mrf.mxu0
        %v920 = vpop.f32.mrf.mxu0
        %v921 = vpop.f32.mrf.mxu0
        %922 = vdwg.mxu0
        %v927 = vunpack.c.l.b16 %v780
        %v928 = vunpack.c.l.b16 %v781
        %v929 = vunpack.c.l.b16 %v782
        %v930 = vunpack.c.l.b16 %v783
        %v931 = vpack.c.b16 %v928, %v927
        %v932 = vpack.c.b16 %v930, %v929
        %935 = vmatprep.subr.bf16.mxu0 0
        %936 = vmatpush1.bf16.msra.mxu0 0
        %937 = vmatprep.subr.bf16.mxu0 0
        %938 = vmatpush1.bf16.msra.mxu0 0
        %939 = vmatprep.subr.bf16.mxu0 0
        %940 = vmatpush1.bf16.msra.mxu0 0
        %941 = vmatprep.subr.bf16.mxu0 0
        %942 = vmatpush1.bf16.msra.mxu0 0
        %943 = vmatprep.subr.bf16.mxu0 0
        %944 = vmatpush1.bf16.msra.mxu0 0
        %945 = vmatprep.subr.bf16.mxu0 0
        %946 = vmatpush1.bf16.msra.mxu0 0
        %947 = vmatprep.subr.bf16.mxu0 0
        %948 = vmatpush1.bf16.msra.mxu0 %v932
        %949 = vmatprep.subr.bf16.mxu0 0
        %950 = vmatpush1.bf16.msra.mxu0 %v931
        %951 = vmatprep.subr.bf16.mxu0 0
        %952 = vmatpush2.bf16.msra.mxu0 0
        %953 = vmatprep.subr.bf16.mxu0 0
        %954 = vmatpush2.bf16.msra.mxu0 0
        %955 = vmatprep.subr.bf16.mxu0 0
        %956 = vmatpush2.bf16.msra.mxu0 0
        %957 = vmatprep.subr.bf16.mxu0 0
        %958 = vmatpush2.bf16.msra.mxu0 0
        %959 = vmatprep.subr.bf16.mxu0 0
        %960 = vmatpush2.bf16.msra.mxu0 0
        %961 = vmatprep.subr.bf16.mxu0 0
        %962 = vmatpush2.bf16.msra.mxu0 0
        %963 = vmatprep.subr.bf16.mxu0 0
        %964 = vmatpush2.bf16.msra.mxu0 0
        %965 = vmatprep.subr.bf16.mxu0 0
        %966 = vmatpush2.bf16.msra.mxu0 0
        %967 = vmatprep.mubr.bf16.mxu0 0
        %968 = vmatmul.mubr.bf16.gmra.mxu0 %v829
        %v969 = vpop.f32.mrf.mxu0
        %v970 = vadd.f32 %v807, %v969
        %v971 = vpop.f32.mrf.mxu0
        %v972 = vpop.f32.mrf.mxu0
        %v973 = vpop.f32.mrf.mxu0
        %974 = vdwg.mxu0
        %v979 = vunpack.c.l.b16 %v784
        %v980 = vunpack.c.l.b16 %v785
        %v981 = vunpack.c.l.b16 %v786
        %v982 = vunpack.c.l.b16 %v787
        %v983 = vpack.c.b16 %v980, %v979
        %v984 = vpack.c.b16 %v982, %v981
        %987 = vmatprep.subr.bf16.mxu0 0
        %988 = vmatpush1.bf16.msra.mxu0 0
        %989 = vmatprep.subr.bf16.mxu0 0
        %990 = vmatpush1.bf16.msra.mxu0 0
        %991 = vmatprep.subr.bf16.mxu0 0
        %992 = vmatpush1.bf16.msra.mxu0 0
        %993 = vmatprep.subr.bf16.mxu0 0
        %994 = vmatpush1.bf16.msra.mxu0 0
        %995 = vmatprep.subr.bf16.mxu0 0
        %996 = vmatpush1.bf16.msra.mxu0 0
        %997 = vmatprep.subr.bf16.mxu0 0
        %998 = vmatpush1.bf16.msra.mxu0 0
        %999 = vmatprep.subr.bf16.mxu0 0
        %1000 = vmatpush1.bf16.msra.mxu0 %v984
        %1001 = vmatprep.subr.bf16.mxu0 0
        %1002 = vmatpush1.bf16.msra.mxu0 %v983
        %1003 = vmatprep.subr.bf16.mxu0 0
        %1004 = vmatpush2.bf16.msra.mxu0 0
        %1005 = vmatprep.subr.bf16.mxu0 0
        %1006 = vmatpush2.bf16.msra.mxu0 0
        %1007 = vmatprep.subr.bf16.mxu0 0
        %1008 = vmatpush2.bf16.msra.mxu0 0
        %1009 = vmatprep.subr.bf16.mxu0 0
        %1010 = vmatpush2.bf16.msra.mxu0 0
        %1011 = vmatprep.subr.bf16.mxu0 0
        %1012 = vmatpush2.bf16.msra.mxu0 0
        %1013 = vmatprep.subr.bf16.mxu0 0
        %1014 = vmatpush2.bf16.msra.mxu0 0
        %1015 = vmatprep.subr.bf16.mxu0 0
        %1016 = vmatpush2.bf16.msra.mxu0 0
        %1017 = vmatprep.subr.bf16.mxu0 0
        %1018 = vmatpush2.bf16.msra.mxu0 0
        %1019 = vmatprep.mubr.bf16.mxu0 0
        %1020 = vmatmul.mubr.bf16.gmra.mxu0 %v829
        %v1021 = vpop.f32.mrf.mxu0
        %v1022 = vadd.f32 %v811, %v1021
        %v1023 = vpop.f32.mrf.mxu0
        %v1024 = vpop.f32.mrf.mxu0
        %v1025 = vpop.f32.mrf.mxu0
        %1026 = vdwg.mxu0
        %v1027 = vld [vmem:[%s6] sm:$0xf]
        %v1028 = vld [vmem:[%s6 + $0x4] sm:$0xf]
        %v1029 = vld [vmem:[%s6 + $0x8] sm:$0xf]
        %v1030 = vld [vmem:[%s6 + $0xc] sm:$0xf]
        %v1031 = vld [vmem:[%s6 + $0x10] sm:$0xf]
        %v1032 = vld [vmem:[%s6 + $0x14] sm:$0xf]
        %v1033 = vld [vmem:[%s6 + $0x18] sm:$0xf]
        %v1034 = vld [vmem:[%s6 + $0x1c] sm:$0xf]
        %v1035 = vld [vmem:[%s6 + $0x20] sm:$0xf]
        %v1036 = vld [vmem:[%s6 + $0x24] sm:$0xf]
        %v1037 = vld [vmem:[%s6 + $0x28] sm:$0xf]
        %v1038 = vld [vmem:[%s6 + $0x2c] sm:$0xf]
        %v1039 = vld [vmem:[%s6 + $0x30] sm:$0xf]
        %v1040 = vld [vmem:[%s6 + $0x34] sm:$0xf]
        %v1041 = vld [vmem:[%s6 + $0x38] sm:$0xf]
        %v1042 = vld [vmem:[%s6 + $0x3c] sm:$0xf]
        %v1043 = vld [vmem:[%s7] sm:$0x1]
        %v1044 = vld [vmem:[%s7 + $0x1] sm:$0x1]
        %v1045 = vld [vmem:[%s7 + $0x2] sm:$0x1]
        %v1046 = vld [vmem:[%s7 + $0x3] sm:$0x1]
        %v1051 = vlaneseq
        %v1052 = vshrl.u32 %v1051, 7
        %v1053 = vsub.s32 0, %v1052
        %v1054 = vrot.slane %v1043, %v1053
        %v1055 = vlaneseq
        %v1056 = vshrl.u32 %v1055, 7
        %v1057 = vsub.s32 0, %v1056
        %v1058 = vrot.slane %v1044, %v1057
        %v1059 = vlaneseq
        %v1060 = vshrl.u32 %v1059, 7
        %v1061 = vsub.s32 0, %v1060
        %v1062 = vrot.slane %v1045, %v1061
        %v1063 = vlaneseq
        %v1064 = vshrl.u32 %v1063, 7
        %v1065 = vsub.s32 0, %v1064
        %v1066 = vrot.slane %v1046, %v1065
        %v1075 = vunpack.c.l.b16 %v1027
        %v1076 = vunpack.c.l.b16 %v1028
        %v1077 = vunpack.c.l.b16 %v1029
        %v1078 = vunpack.c.l.b16 %v1030
        %v1079 = vpack.c.b16 %v1076, %v1075
        %v1080 = vpack.c.b16 %v1078, %v1077
        %v1084 = vsel %vm724, %v771, 0
        %1086 = vmatprep.subr.bf16.mxu0 0
        %1087 = vmatpush1.bf16.msra.mxu0 0
        %1088 = vmatprep.subr.bf16.mxu0 0
        %1089 = vmatpush1.bf16.msra.mxu0 0
        %1090 = vmatprep.subr.bf16.mxu0 0
        %1091 = vmatpush1.bf16.msra.mxu0 0
        %1092 = vmatprep.subr.bf16.mxu0 0
        %1093 = vmatpush1.bf16.msra.mxu0 0
        %1094 = vmatprep.subr.bf16.mxu0 0
        %1095 = vmatpush1.bf16.msra.mxu0 0
        %1096 = vmatprep.subr.bf16.mxu0 0
        %1097 = vmatpush1.bf16.msra.mxu0 0
        %1098 = vmatprep.subr.bf16.mxu0 0
        %1099 = vmatpush1.bf16.msra.mxu0 %v1080
        %1100 = vmatprep.subr.bf16.mxu0 0
        %1101 = vmatpush1.bf16.msra.mxu0 %v1079
        %1102 = vmatprep.subr.bf16.mxu0 0
        %1103 = vmatpush2.bf16.msra.mxu0 0
        %1104 = vmatprep.subr.bf16.mxu0 0
        %1105 = vmatpush2.bf16.msra.mxu0 0
        %1106 = vmatprep.subr.bf16.mxu0 0
        %1107 = vmatpush2.bf16.msra.mxu0 0
        %1108 = vmatprep.subr.bf16.mxu0 0
        %1109 = vmatpush2.bf16.msra.mxu0 0
        %1110 = vmatprep.subr.bf16.mxu0 0
        %1111 = vmatpush2.bf16.msra.mxu0 0
        %1112 = vmatprep.subr.bf16.mxu0 0
        %1113 = vmatpush2.bf16.msra.mxu0 0
        %1114 = vmatprep.subr.bf16.mxu0 0
        %1115 = vmatpush2.bf16.msra.mxu0 0
        %1116 = vmatprep.subr.bf16.mxu0 0
        %1117 = vmatpush2.bf16.msra.mxu0 0
        %1118 = vmatprep.mubr.bf16.mxu0 0
        %1119 = vmatmul.mubr.bf16.gmra.mxu0 %v1084
        %v1120 = vpop.f32.mrf.mxu0
        %v1121 = vadd.f32 %v1054, %v1120
        %v1122 = vpop.f32.mrf.mxu0
        %v1123 = vpop.f32.mrf.mxu0
        %v1124 = vpop.f32.mrf.mxu0
        %1125 = vdwg.mxu0
        %v1130 = vunpack.c.l.b16 %v1031
        %v1131 = vunpack.c.l.b16 %v1032
        %v1132 = vunpack.c.l.b16 %v1033
        %v1133 = vunpack.c.l.b16 %v1034
        %v1134 = vpack.c.b16 %v1131, %v1130
        %v1135 = vpack.c.b16 %v1133, %v1132
        %1138 = vmatprep.subr.bf16.mxu0 0
        %1139 = vmatpush1.bf16.msra.mxu0 0
        %1140 = vmatprep.subr.bf16.mxu0 0
        %1141 = vmatpush1.bf16.msra.mxu0 0
        %1142 = vmatprep.subr.bf16.mxu0 0
        %1143 = vmatpush1.bf16.msra.mxu0 0
        %1144 = vmatprep.subr.bf16.mxu0 0
        %1145 = vmatpush1.bf16.msra.mxu0 0
        %1146 = vmatprep.subr.bf16.mxu0 0
        %1147 = vmatpush1.bf16.msra.mxu0 0
        %1148 = vmatprep.subr.bf16.mxu0 0
        %1149 = vmatpush1.bf16.msra.mxu0 0
        %1150 = vmatprep.subr.bf16.mxu0 0
        %1151 = vmatpush1.bf16.msra.mxu0 %v1135
        %1152 = vmatprep.subr.bf16.mxu0 0
        %1153 = vmatpush1.bf16.msra.mxu0 %v1134
        %1154 = vmatprep.subr.bf16.mxu0 0
        %1155 = vmatpush2.bf16.msra.mxu0 0
        %1156 = vmatprep.subr.bf16.mxu0 0
        %1157 = vmatpush2.bf16.msra.mxu0 0
        %1158 = vmatprep.subr.bf16.mxu0 0
        %1159 = vmatpush2.bf16.msra.mxu0 0
        %1160 = vmatprep.subr.bf16.mxu0 0
        %1161 = vmatpush2.bf16.msra.mxu0 0
        %1162 = vmatprep.subr.bf16.mxu0 0
        %1163 = vmatpush2.bf16.msra.mxu0 0
        %1164 = vmatprep.subr.bf16.mxu0 0
        %1165 = vmatpush2.bf16.msra.mxu0 0
        %1166 = vmatprep.subr.bf16.mxu0 0
        %1167 = vmatpush2.bf16.msra.mxu0 0
        %1168 = vmatprep.subr.bf16.mxu0 0
        %1169 = vmatpush2.bf16.msra.mxu0 0
        %1170 = vmatprep.mubr.bf16.mxu0 0
        %1171 = vmatmul.mubr.bf16.gmra.mxu0 %v1084
        %v1172 = vpop.f32.mrf.mxu0
        %v1173 = vadd.f32 %v1058, %v1172
        %v1174 = vpop.f32.mrf.mxu0
        %v1175 = vpop.f32.mrf.mxu0
        %v1176 = vpop.f32.mrf.mxu0
        %1177 = vdwg.mxu0
        %v1182 = vunpack.c.l.b16 %v1035
        %v1183 = vunpack.c.l.b16 %v1036
        %v1184 = vunpack.c.l.b16 %v1037
        %v1185 = vunpack.c.l.b16 %v1038
        %v1186 = vpack.c.b16 %v1183, %v1182
        %v1187 = vpack.c.b16 %v1185, %v1184
        %1190 = vmatprep.subr.bf16.mxu0 0
        %1191 = vmatpush1.bf16.msra.mxu0 0
        %1192 = vmatprep.subr.bf16.mxu0 0
        %1193 = vmatpush1.bf16.msra.mxu0 0
        %1194 = vmatprep.subr.bf16.mxu0 0
        %1195 = vmatpush1.bf16.msra.mxu0 0
        %1196 = vmatprep.subr.bf16.mxu0 0
        %1197 = vmatpush1.bf16.msra.mxu0 0
        %1198 = vmatprep.subr.bf16.mxu0 0
        %1199 = vmatpush1.bf16.msra.mxu0 0
        %1200 = vmatprep.subr.bf16.mxu0 0
        %1201 = vmatpush1.bf16.msra.mxu0 0
        %1202 = vmatprep.subr.bf16.mxu0 0
        %1203 = vmatpush1.bf16.msra.mxu0 %v1187
        %1204 = vmatprep.subr.bf16.mxu0 0
        %1205 = vmatpush1.bf16.msra.mxu0 %v1186
        %1206 = vmatprep.subr.bf16.mxu0 0
        %1207 = vmatpush2.bf16.msra.mxu0 0
        %1208 = vmatprep.subr.bf16.mxu0 0
        %1209 = vmatpush2.bf16.msra.mxu0 0
        %1210 = vmatprep.subr.bf16.mxu0 0
        %1211 = vmatpush2.bf16.msra.mxu0 0
        %1212 = vmatprep.subr.bf16.mxu0 0
        %1213 = vmatpush2.bf16.msra.mxu0 0
        %1214 = vmatprep.subr.bf16.mxu0 0
        %1215 = vmatpush2.bf16.msra.mxu0 0
        %1216 = vmatprep.subr.bf16.mxu0 0
        %1217 = vmatpush2.bf16.msra.mxu0 0
        %1218 = vmatprep.subr.bf16.mxu0 0
        %1219 = vmatpush2.bf16.msra.mxu0 0
        %1220 = vmatprep.subr.bf16.mxu0 0
        %1221 = vmatpush2.bf16.msra.mxu0 0
        %1222 = vmatprep.mubr.bf16.mxu0 0
        %1223 = vmatmul.mubr.bf16.gmra.mxu0 %v1084
        %v1224 = vpop.f32.mrf.mxu0
        %v1225 = vadd.f32 %v1062, %v1224
        %v1226 = vpop.f32.mrf.mxu0
        %v1227 = vpop.f32.mrf.mxu0
        %v1228 = vpop.f32.mrf.mxu0
        %1229 = vdwg.mxu0
        %v1234 = vunpack.c.l.b16 %v1039
        %v1235 = vunpack.c.l.b16 %v1040
        %v1236 = vunpack.c.l.b16 %v1041
        %v1237 = vunpack.c.l.b16 %v1042
        %v1238 = vpack.c.b16 %v1235, %v1234
        %v1239 = vpack.c.b16 %v1237, %v1236
        %1242 = vmatprep.subr.bf16.mxu0 0
        %1243 = vmatpush1.bf16.msra.mxu0 0
        %1244 = vmatprep.subr.bf16.mxu0 0
        %1245 = vmatpush1.bf16.msra.mxu0 0
        %1246 = vmatprep.subr.bf16.mxu0 0
        %1247 = vmatpush1.bf16.msra.mxu0 0
        %1248 = vmatprep.subr.bf16.mxu0 0
        %1249 = vmatpush1.bf16.msra.mxu0 0
        %1250 = vmatprep.subr.bf16.mxu0 0
        %1251 = vmatpush1.bf16.msra.mxu0 0
        %1252 = vmatprep.subr.bf16.mxu0 0
        %1253 = vmatpush1.bf16.msra.mxu0 0
        %1254 = vmatprep.subr.bf16.mxu0 0
        %1255 = vmatpush1.bf16.msra.mxu0 %v1239
        %1256 = vmatprep.subr.bf16.mxu0 0
        %1257 = vmatpush1.bf16.msra.mxu0 %v1238
        %1258 = vmatprep.subr.bf16.mxu0 0
        %1259 = vmatpush2.bf16.msra.mxu0 0
        %1260 = vmatprep.subr.bf16.mxu0 0
        %1261 = vmatpush2.bf16.msra.mxu0 0
        %1262 = vmatprep.subr.bf16.mxu0 0
        %1263 = vmatpush2.bf16.msra.mxu0 0
        %1264 = vmatprep.subr.bf16.mxu0 0
        %1265 = vmatpush2.bf16.msra.mxu0 0
        %1266 = vmatprep.subr.bf16.mxu0 0
        %1267 = vmatpush2.bf16.msra.mxu0 0
        %1268 = vmatprep.subr.bf16.mxu0 0
        %1269 = vmatpush2.bf16.msra.mxu0 0
        %1270 = vmatprep.subr.bf16.mxu0 0
        %1271 = vmatpush2.bf16.msra.mxu0 0
        %1272 = vmatprep.subr.bf16.mxu0 0
        %1273 = vmatpush2.bf16.msra.mxu0 0
        %1274 = vmatprep.mubr.bf16.mxu0 0
        %1275 = vmatmul.mubr.bf16.gmra.mxu0 %v1084
        %v1276 = vpop.f32.mrf.mxu0
        %v1277 = vadd.f32 %v1066, %v1276
        %v1278 = vpop.f32.mrf.mxu0
        %v1279 = vpop.f32.mrf.mxu0
        %v1280 = vpop.f32.mrf.mxu0
        %1281 = vdwg.mxu0
        %v1282 = vld [vmem:[%s8] sm:$0xf]
        %v1283 = vld [vmem:[%s8 + $0x4] sm:$0xf]
        %v1284 = vld [vmem:[%s8 + $0x8] sm:$0xf]
        %v1285 = vld [vmem:[%s8 + $0xc] sm:$0xf]
        %v1286 = vld [vmem:[%s8 + $0x10] sm:$0xf]
        %v1287 = vld [vmem:[%s8 + $0x14] sm:$0xf]
        %v1288 = vld [vmem:[%s8 + $0x18] sm:$0xf]
        %v1289 = vld [vmem:[%s8 + $0x1c] sm:$0xf]
        %v1290 = vld [vmem:[%s8 + $0x20] sm:$0xf]
        %v1291 = vld [vmem:[%s8 + $0x24] sm:$0xf]
        %v1292 = vld [vmem:[%s8 + $0x28] sm:$0xf]
        %v1293 = vld [vmem:[%s8 + $0x2c] sm:$0xf]
        %v1294 = vld [vmem:[%s8 + $0x30] sm:$0xf]
        %v1295 = vld [vmem:[%s8 + $0x34] sm:$0xf]
        %v1296 = vld [vmem:[%s8 + $0x38] sm:$0xf]
        %v1297 = vld [vmem:[%s8 + $0x3c] sm:$0xf]
        %v1298 = vld [vmem:[%s9] sm:$0x1]
        %v1299 = vld [vmem:[%s9 + $0x1] sm:$0x1]
        %v1300 = vld [vmem:[%s9 + $0x2] sm:$0x1]
        %v1301 = vld [vmem:[%s9 + $0x3] sm:$0x1]
        %v1306 = vlaneseq
        %v1307 = vshrl.u32 %v1306, 7
        %v1308 = vsub.s32 0, %v1307
        %v1309 = vrot.slane %v1298, %v1308
        %v1310 = vlaneseq
        %v1311 = vshrl.u32 %v1310, 7
        %v1312 = vsub.s32 0, %v1311
        %v1313 = vrot.slane %v1299, %v1312
        %v1314 = vlaneseq
        %v1315 = vshrl.u32 %v1314, 7
        %v1316 = vsub.s32 0, %v1315
        %v1317 = vrot.slane %v1300, %v1316
        %v1318 = vlaneseq
        %v1319 = vshrl.u32 %v1318, 7
        %v1320 = vsub.s32 0, %v1319
        %v1321 = vrot.slane %v1301, %v1320
        %v1330 = vunpack.c.l.b16 %v1282
        %v1331 = vunpack.c.l.b16 %v1283
        %v1332 = vunpack.c.l.b16 %v1284
        %v1333 = vunpack.c.l.b16 %v1285
        %v1334 = vpack.c.b16 %v1331, %v1330
        %v1335 = vpack.c.b16 %v1333, %v1332
        %1338 = vmatprep.subr.bf16.mxu0 0
        %1339 = vmatpush1.bf16.msra.mxu0 0
        %1340 = vmatprep.subr.bf16.mxu0 0
        %1341 = vmatpush1.bf16.msra.mxu0 0
        %1342 = vmatprep.subr.bf16.mxu0 0
        %1343 = vmatpush1.bf16.msra.mxu0 0
        %1344 = vmatprep.subr.bf16.mxu0 0
        %1345 = vmatpush1.bf16.msra.mxu0 0
        %1346 = vmatprep.subr.bf16.mxu0 0
        %1347 = vmatpush1.bf16.msra.mxu0 0
        %1348 = vmatprep.subr.bf16.mxu0 0
        %1349 = vmatpush1.bf16.msra.mxu0 0
        %1350 = vmatprep.subr.bf16.mxu0 0
        %1351 = vmatpush1.bf16.msra.mxu0 %v1335
        %1352 = vmatprep.subr.bf16.mxu0 0
        %1353 = vmatpush1.bf16.msra.mxu0 %v1334
        %1354 = vmatprep.subr.bf16.mxu0 0
        %1355 = vmatpush2.bf16.msra.mxu0 0
        %1356 = vmatprep.subr.bf16.mxu0 0
        %1357 = vmatpush2.bf16.msra.mxu0 0
        %1358 = vmatprep.subr.bf16.mxu0 0
        %1359 = vmatpush2.bf16.msra.mxu0 0
        %1360 = vmatprep.subr.bf16.mxu0 0
        %1361 = vmatpush2.bf16.msra.mxu0 0
        %1362 = vmatprep.subr.bf16.mxu0 0
        %1363 = vmatpush2.bf16.msra.mxu0 0
        %1364 = vmatprep.subr.bf16.mxu0 0
        %1365 = vmatpush2.bf16.msra.mxu0 0
        %1366 = vmatprep.subr.bf16.mxu0 0
        %1367 = vmatpush2.bf16.msra.mxu0 0
        %1368 = vmatprep.subr.bf16.mxu0 0
        %1369 = vmatpush2.bf16.msra.mxu0 0
        %1370 = vmatprep.mubr.bf16.mxu0 0
        %1371 = vmatmul.mubr.bf16.gmra.mxu0 %v1084
        %v1372 = vpop.f32.mrf.mxu0
        %v1373 = vadd.f32 %v1309, %v1372
        %v1374 = vpop.f32.mrf.mxu0
        %v1375 = vpop.f32.mrf.mxu0
        %v1376 = vpop.f32.mrf.mxu0
        %1377 = vdwg.mxu0
        %v1382 = vunpack.c.l.b16 %v1286
        %v1383 = vunpack.c.l.b16 %v1287
        %v1384 = vunpack.c.l.b16 %v1288
        %v1385 = vunpack.c.l.b16 %v1289
        %v1386 = vpack.c.b16 %v1383, %v1382
        %v1387 = vpack.c.b16 %v1385, %v1384
        %1390 = vmatprep.subr.bf16.mxu0 0
        %1391 = vmatpush1.bf16.msra.mxu0 0
        %1392 = vmatprep.subr.bf16.mxu0 0
        %1393 = vmatpush1.bf16.msra.mxu0 0
        %1394 = vmatprep.subr.bf16.mxu0 0
        %1395 = vmatpush1.bf16.msra.mxu0 0
        %1396 = vmatprep.subr.bf16.mxu0 0
        %1397 = vmatpush1.bf16.msra.mxu0 0
        %1398 = vmatprep.subr.bf16.mxu0 0
        %1399 = vmatpush1.bf16.msra.mxu0 0
        %1400 = vmatprep.subr.bf16.mxu0 0
        %1401 = vmatpush1.bf16.msra.mxu0 0
        %1402 = vmatprep.subr.bf16.mxu0 0
        %1403 = vmatpush1.bf16.msra.mxu0 %v1387
        %1404 = vmatprep.subr.bf16.mxu0 0
        %1405 = vmatpush1.bf16.msra.mxu0 %v1386
        %1406 = vmatprep.subr.bf16.mxu0 0
        %1407 = vmatpush2.bf16.msra.mxu0 0
        %1408 = vmatprep.subr.bf16.mxu0 0
        %1409 = vmatpush2.bf16.msra.mxu0 0
        %1410 = vmatprep.subr.bf16.mxu0 0
        %1411 = vmatpush2.bf16.msra.mxu0 0
        %1412 = vmatprep.subr.bf16.mxu0 0
        %1413 = vmatpush2.bf16.msra.mxu0 0
        %1414 = vmatprep.subr.bf16.mxu0 0
        %1415 = vmatpush2.bf16.msra.mxu0 0
        %1416 = vmatprep.subr.bf16.mxu0 0
        %1417 = vmatpush2.bf16.msra.mxu0 0
        %1418 = vmatprep.subr.bf16.mxu0 0
        %1419 = vmatpush2.bf16.msra.mxu0 0
        %1420 = vmatprep.subr.bf16.mxu0 0
        %1421 = vmatpush2.bf16.msra.mxu0 0
        %1422 = vmatprep.mubr.bf16.mxu0 0
        %1423 = vmatmul.mubr.bf16.gmra.mxu0 %v1084
        %v1424 = vpop.f32.mrf.mxu0
        %v1425 = vadd.f32 %v1313, %v1424
        %v1426 = vpop.f32.mrf.mxu0
        %v1427 = vpop.f32.mrf.mxu0
        %v1428 = vpop.f32.mrf.mxu0
        %1429 = vdwg.mxu0
        %v1434 = vunpack.c.l.b16 %v1290
        %v1435 = vunpack.c.l.b16 %v1291
        %v1436 = vunpack.c.l.b16 %v1292
        %v1437 = vunpack.c.l.b16 %v1293
        %v1438 = vpack.c.b16 %v1435, %v1434
        %v1439 = vpack.c.b16 %v1437, %v1436
        %1442 = vmatprep.subr.bf16.mxu0 0
        %1443 = vmatpush1.bf16.msra.mxu0 0
        %1444 = vmatprep.subr.bf16.mxu0 0
        %1445 = vmatpush1.bf16.msra.mxu0 0
        %1446 = vmatprep.subr.bf16.mxu0 0
        %1447 = vmatpush1.bf16.msra.mxu0 0
        %1448 = vmatprep.subr.bf16.mxu0 0
        %1449 = vmatpush1.bf16.msra.mxu0 0
        %1450 = vmatprep.subr.bf16.mxu0 0
        %1451 = vmatpush1.bf16.msra.mxu0 0
        %1452 = vmatprep.subr.bf16.mxu0 0
        %1453 = vmatpush1.bf16.msra.mxu0 0
        %1454 = vmatprep.subr.bf16.mxu0 0
        %1455 = vmatpush1.bf16.msra.mxu0 %v1439
        %1456 = vmatprep.subr.bf16.mxu0 0
        %1457 = vmatpush1.bf16.msra.mxu0 %v1438
        %1458 = vmatprep.subr.bf16.mxu0 0
        %1459 = vmatpush2.bf16.msra.mxu0 0
        %1460 = vmatprep.subr.bf16.mxu0 0
        %1461 = vmatpush2.bf16.msra.mxu0 0
        %1462 = vmatprep.subr.bf16.mxu0 0
        %1463 = vmatpush2.bf16.msra.mxu0 0
        %1464 = vmatprep.subr.bf16.mxu0 0
        %1465 = vmatpush2.bf16.msra.mxu0 0
        %1466 = vmatprep.subr.bf16.mxu0 0
        %1467 = vmatpush2.bf16.msra.mxu0 0
        %1468 = vmatprep.subr.bf16.mxu0 0
        %1469 = vmatpush2.bf16.msra.mxu0 0
        %1470 = vmatprep.subr.bf16.mxu0 0
        %1471 = vmatpush2.bf16.msra.mxu0 0
        %1472 = vmatprep.subr.bf16.mxu0 0
        %1473 = vmatpush2.bf16.msra.mxu0 0
        %1474 = vmatprep.mubr.bf16.mxu0 0
        %1475 = vmatmul.mubr.bf16.gmra.mxu0 %v1084
        %v1476 = vpop.f32.mrf.mxu0
        %v1477 = vadd.f32 %v1317, %v1476
        %v1478 = vpop.f32.mrf.mxu0
        %v1479 = vpop.f32.mrf.mxu0
        %v1480 = vpop.f32.mrf.mxu0
        %1481 = vdwg.mxu0
        %v1486 = vunpack.c.l.b16 %v1294
        %v1487 = vunpack.c.l.b16 %v1295
        %v1488 = vunpack.c.l.b16 %v1296
        %v1489 = vunpack.c.l.b16 %v1297
        %v1490 = vpack.c.b16 %v1487, %v1486
        %v1491 = vpack.c.b16 %v1489, %v1488
        %1494 = vmatprep.subr.bf16.mxu0 0
        %1495 = vmatpush1.bf16.msra.mxu0 0
        %1496 = vmatprep.subr.bf16.mxu0 0
        %1497 = vmatpush1.bf16.msra.mxu0 0
        %1498 = vmatprep.subr.bf16.mxu0 0
        %1499 = vmatpush1.bf16.msra.mxu0 0
        %1500 = vmatprep.subr.bf16.mxu0 0
        %1501 = vmatpush1.bf16.msra.mxu0 0
        %1502 = vmatprep.subr.bf16.mxu0 0
        %1503 = vmatpush1.bf16.msra.mxu0 0
        %1504 = vmatprep.subr.bf16.mxu0 0
        %1505 = vmatpush1.bf16.msra.mxu0 0
        %1506 = vmatprep.subr.bf16.mxu0 0
        %1507 = vmatpush1.bf16.msra.mxu0 %v1491
        %1508 = vmatprep.subr.bf16.mxu0 0
        %1509 = vmatpush1.bf16.msra.mxu0 %v1490
        %1510 = vmatprep.subr.bf16.mxu0 0
        %1511 = vmatpush2.bf16.msra.mxu0 0
        %1512 = vmatprep.subr.bf16.mxu0 0
        %1513 = vmatpush2.bf16.msra.mxu0 0
        %1514 = vmatprep.subr.bf16.mxu0 0
        %1515 = vmatpush2.bf16.msra.mxu0 0
        %1516 = vmatprep.subr.bf16.mxu0 0
        %1517 = vmatpush2.bf16.msra.mxu0 0
        %1518 = vmatprep.subr.bf16.mxu0 0
        %1519 = vmatpush2.bf16.msra.mxu0 0
        %1520 = vmatprep.subr.bf16.mxu0 0
        %1521 = vmatpush2.bf16.msra.mxu0 0
        %1522 = vmatprep.subr.bf16.mxu0 0
        %1523 = vmatpush2.bf16.msra.mxu0 0
        %1524 = vmatprep.subr.bf16.mxu0 0
        %1525 = vmatpush2.bf16.msra.mxu0 0
        %1526 = vmatprep.mubr.bf16.mxu0 0
        %1527 = vmatmul.mubr.bf16.gmra.mxu0 %v1084
        %v1528 = vpop.f32.mrf.mxu0
        %v1529 = vadd.f32 %v1321, %v1528
        %v1530 = vpop.f32.mrf.mxu0
        %v1531 = vpop.f32.mrf.mxu0
        %v1532 = vpop.f32.mrf.mxu0
        %1533 = vdwg.mxu0
        %v1534 = vpack.c.bf16 %v866, %v866
        %v1535 = vpack.c.bf16 %v918, %v918
        %v1536 = vpack.c.bf16 %v970, %v970
        %v1537 = vpack.c.bf16 %v1022, %v1022
        %v1538 = vpack.c.bf16 %v1121, %v1121
        %v1539 = vpack.c.bf16 %v1173, %v1173
        %v1540 = vpack.c.bf16 %v1225, %v1225
        %v1541 = vpack.c.bf16 %v1277, %v1277
        %vm1542 = vcmask 64512
        %v1544 = vsel %vm1542, %v1534, 0
        %v1547 = vsel %vm1542, %v1538, 0
        %1549 = vmatprep.subr.bf16.mxu0 0
        %1550 = vmatpush1.bf16.xpose.msra.mxu0 0
        %1551 = vmatprep.subr.bf16.mxu0 0
        %1552 = vmatpush1.bf16.xpose.msra.mxu0 0
        %1553 = vmatprep.subr.bf16.mxu0 0
        %1554 = vmatpush1.bf16.xpose.msra.mxu0 0
        %1555 = vmatprep.subr.bf16.mxu0 0
        %1556 = vmatpush1.bf16.xpose.msra.mxu0 0
        %1557 = vmatprep.subr.bf16.mxu0 0
        %1558 = vmatpush1.bf16.xpose.msra.mxu0 0
        %1559 = vmatprep.subr.bf16.mxu0 0
        %1560 = vmatpush1.bf16.xpose.msra.mxu0 0
        %1561 = vmatprep.subr.bf16.mxu0 0
        %1562 = vmatpush1.bf16.xpose.msra.mxu0 0
        %1563 = vmatprep.subr.bf16.mxu0 0
        %1564 = vmatpush1.bf16.xpose.msra.mxu0 %v1547
        %1565 = vmatprep.subr.bf16.mxu0 0
        %1566 = vmatpush2.bf16.xpose.msra.mxu0 0
        %1567 = vmatprep.subr.bf16.mxu0 0
        %1568 = vmatpush2.bf16.xpose.msra.mxu0 0
        %1569 = vmatprep.subr.bf16.mxu0 0
        %1570 = vmatpush2.bf16.xpose.msra.mxu0 0
        %1571 = vmatprep.subr.bf16.mxu0 0
        %1572 = vmatpush2.bf16.xpose.msra.mxu0 0
        %1573 = vmatprep.subr.bf16.mxu0 0
        %1574 = vmatpush2.bf16.xpose.msra.mxu0 0
        %1575 = vmatprep.subr.bf16.mxu0 0
        %1576 = vmatpush2.bf16.xpose.msra.mxu0 0
        %1577 = vmatprep.subr.bf16.mxu0 0
        %1578 = vmatpush2.bf16.xpose.msra.mxu0 0
        %1579 = vmatprep.subr.bf16.mxu0 0
        %1580 = vmatpush2.bf16.xpose.msra.mxu0 0
        %1581 = vmatprep.mubr.bf16.mxu0 0
        %1582 = vmatmul.mubr.bf16.gmra.mxu0 %v1544
        %v1583 = vpop.f32.mrf.mxu0
        %v1584 = vadd.f32 0.0, %v1583
        %v1585 = vpop.f32.mrf.mxu0
        %v1586 = vpop.f32.mrf.mxu0
        %v1587 = vpop.f32.mrf.mxu0
        %1588 = vdwg.mxu0
        %v1590 = vsel %vm1542, %v1535, 0
        %v1593 = vsel %vm1542, %v1539, 0
        %1595 = vmatprep.subr.bf16.mxu0 0
        %1596 = vmatpush1.bf16.xpose.msra.mxu0 0
        %1597 = vmatprep.subr.bf16.mxu0 0
        %1598 = vmatpush1.bf16.xpose.msra.mxu0 0
        %1599 = vmatprep.subr.bf16.mxu0 0
        %1600 = vmatpush1.bf16.xpose.msra.mxu0 0
        %1601 = vmatprep.subr.bf16.mxu0 0
        %1602 = vmatpush1.bf16.xpose.msra.mxu0 0
        %1603 = vmatprep.subr.bf16.mxu0 0
        %1604 = vmatpush1.bf16.xpose.msra.mxu0 0
        %1605 = vmatprep.subr.bf16.mxu0 0
        %1606 = vmatpush1.bf16.xpose.msra.mxu0 0
        %1607 = vmatprep.subr.bf16.mxu0 0
        %1608 = vmatpush1.bf16.xpose.msra.mxu0 0
        %1609 = vmatprep.subr.bf16.mxu0 0
        %1610 = vmatpush1.bf16.xpose.msra.mxu0 %v1593
        %1611 = vmatprep.subr.bf16.mxu0 0
        %1612 = vmatpush2.bf16.xpose.msra.mxu0 0
        %1613 = vmatprep.subr.bf16.mxu0 0
        %1614 = vmatpush2.bf16.xpose.msra.mxu0 0
        %1615 = vmatprep.subr.bf16.mxu0 0
        %1616 = vmatpush2.bf16.xpose.msra.mxu0 0
        %1617 = vmatprep.subr.bf16.mxu0 0
        %1618 = vmatpush2.bf16.xpose.msra.mxu0 0
        %1619 = vmatprep.subr.bf16.mxu0 0
        %1620 = vmatpush2.bf16.xpose.msra.mxu0 0
        %1621 = vmatprep.subr.bf16.mxu0 0
        %1622 = vmatpush2.bf16.xpose.msra.mxu0 0
        %1623 = vmatprep.subr.bf16.mxu0 0
        %1624 = vmatpush2.bf16.xpose.msra.mxu0 0
        %1625 = vmatprep.subr.bf16.mxu0 0
        %1626 = vmatpush2.bf16.xpose.msra.mxu0 0
        %1627 = vmatprep.mubr.bf16.mxu0 0
        %1628 = vmatmul.mubr.bf16.gmra.mxu0 %v1590
        %v1629 = vpop.f32.mrf.mxu0
        %v1630 = vadd.f32 0.0, %v1629
        %v1631 = vpop.f32.mrf.mxu0
        %v1632 = vpop.f32.mrf.mxu0
        %v1633 = vpop.f32.mrf.mxu0
        %1634 = vdwg.mxu0
        %v1636 = vsel %vm1542, %v1536, 0
        %v1639 = vsel %vm1542, %v1540, 0
        %1641 = vmatprep.subr.bf16.mxu0 0
        %1642 = vmatpush1.bf16.xpose.msra.mxu0 0
        %1643 = vmatprep.subr.bf16.mxu0 0
        %1644 = vmatpush1.bf16.xpose.msra.mxu0 0
        %1645 = vmatprep.subr.bf16.mxu0 0
        %1646 = vmatpush1.bf16.xpose.msra.mxu0 0
        %1647 = vmatprep.subr.bf16.mxu0 0
        %1648 = vmatpush1.bf16.xpose.msra.mxu0 0
        %1649 = vmatprep.subr.bf16.mxu0 0
        %1650 = vmatpush1.bf16.xpose.msra.mxu0 0
        %1651 = vmatprep.subr.bf16.mxu0 0
        %1652 = vmatpush1.bf16.xpose.msra.mxu0 0
        %1653 = vmatprep.subr.bf16.mxu0 0
        %1654 = vmatpush1.bf16.xpose.msra.mxu0 0
        %1655 = vmatprep.subr.bf16.mxu0 0
        %1656 = vmatpush1.bf16.xpose.msra.mxu0 %v1639
        %1657 = vmatprep.subr.bf16.mxu0 0
        %1658 = vmatpush2.bf16.xpose.msra.mxu0 0
        %1659 = vmatprep.subr.bf16.mxu0 0
        %1660 = vmatpush2.bf16.xpose.msra.mxu0 0
        %1661 = vmatprep.subr.bf16.mxu0 0
        %1662 = vmatpush2.bf16.xpose.msra.mxu0 0
        %1663 = vmatprep.subr.bf16.mxu0 0
        %1664 = vmatpush2.bf16.xpose.msra.mxu0 0
        %1665 = vmatprep.subr.bf16.mxu0 0
        %1666 = vmatpush2.bf16.xpose.msra.mxu0 0
        %1667 = vmatprep.subr.bf16.mxu0 0
        %1668 = vmatpush2.bf16.xpose.msra.mxu0 0
        %1669 = vmatprep.subr.bf16.mxu0 0
        %1670 = vmatpush2.bf16.xpose.msra.mxu0 0
        %1671 = vmatprep.subr.bf16.mxu0 0
        %1672 = vmatpush2.bf16.xpose.msra.mxu0 0
        %1673 = vmatprep.mubr.bf16.mxu0 0
        %1674 = vmatmul.mubr.bf16.gmra.mxu0 %v1636
        %v1675 = vpop.f32.mrf.mxu0
        %v1676 = vadd.f32 0.0, %v1675
        %v1677 = vpop.f32.mrf.mxu0
        %v1678 = vpop.f32.mrf.mxu0
        %v1679 = vpop.f32.mrf.mxu0
        %1680 = vdwg.mxu0
        %v1682 = vsel %vm1542, %v1537, 0
        %v1685 = vsel %vm1542, %v1541, 0
        %1687 = vmatprep.subr.bf16.mxu0 0
        %1688 = vmatpush1.bf16.xpose.msra.mxu0 0
        %1689 = vmatprep.subr.bf16.mxu0 0
        %1690 = vmatpush1.bf16.xpose.msra.mxu0 0
        %1691 = vmatprep.subr.bf16.mxu0 0
        %1692 = vmatpush1.bf16.xpose.msra.mxu0 0
        %1693 = vmatprep.subr.bf16.mxu0 0
        %1694 = vmatpush1.bf16.xpose.msra.mxu0 0
        %1695 = vmatprep.subr.bf16.mxu0 0
        %1696 = vmatpush1.bf16.xpose.msra.mxu0 0
        %1697 = vmatprep.subr.bf16.mxu0 0
        %1698 = vmatpush1.bf16.xpose.msra.mxu0 0
        %1699 = vmatprep.subr.bf16.mxu0 0
        %1700 = vmatpush1.bf16.xpose.msra.mxu0 0
        %1701 = vmatprep.subr.bf16.mxu0 0
        %1702 = vmatpush1.bf16.xpose.msra.mxu0 %v1685
        %1703 = vmatprep.subr.bf16.mxu0 0
        %1704 = vmatpush2.bf16.xpose.msra.mxu0 0
        %1705 = vmatprep.subr.bf16.mxu0 0
        %1706 = vmatpush2.bf16.xpose.msra.mxu0 0
        %1707 = vmatprep.subr.bf16.mxu0 0
        %1708 = vmatpush2.bf16.xpose.msra.mxu0 0
        %1709 = vmatprep.subr.bf16.mxu0 0
        %1710 = vmatpush2.bf16.xpose.msra.mxu0 0
        %1711 = vmatprep.subr.bf16.mxu0 0
        %1712 = vmatpush2.bf16.xpose.msra.mxu0 0
        %1713 = vmatprep.subr.bf16.mxu0 0
        %1714 = vmatpush2.bf16.xpose.msra.mxu0 0
        %1715 = vmatprep.subr.bf16.mxu0 0
        %1716 = vmatpush2.bf16.xpose.msra.mxu0 0
        %1717 = vmatprep.subr.bf16.mxu0 0
        %1718 = vmatpush2.bf16.xpose.msra.mxu0 0
        %1719 = vmatprep.mubr.bf16.mxu0 0
        %1720 = vmatmul.mubr.bf16.gmra.mxu0 %v1682
        %v1721 = vpop.f32.mrf.mxu0
        %v1722 = vadd.f32 0.0, %v1721
        %v1723 = vpop.f32.mrf.mxu0
        %v1724 = vpop.f32.mrf.mxu0
        %v1725 = vpop.f32.mrf.mxu0
        %1726 = vdwg.mxu0
        %v1727 = vsel %vm1542, %v1584, -inf
        %1728 = vmax.xlane.f32.xlu0 %v1727
        %v1729 = vpop.xlane.xlu0 %1728
        %v1730 = vsel %vm1542, %v1630, -inf
        %1731 = vmax.xlane.f32.xlu0 %v1730
        %v1732 = vpop.xlane.xlu0 %1731
        %v1733 = vsel %vm1542, %v1676, -inf
        %1734 = vmax.xlane.f32.xlu0 %v1733
        %v1735 = vpop.xlane.xlu0 %1734
        %v1736 = vsel %vm1542, %v1722, -inf
        %1737 = vmax.xlane.f32.xlu0 %v1736
        %v1738 = vpop.xlane.xlu0 %1737
        %v1739 = vsub.f32 %v1584, %v1729
        %v1740 = vsub.f32 %v1630, %v1732
        %v1741 = vsub.f32 %v1676, %v1735
        %v1742 = vsub.f32 %v1722, %v1738
        %v1743 = vmul.f32 %v1739, 1.442695
        %v1744 = vpow.pop %v1743
        %v1745 = vmul.f32 %v1740, 1.442695
        %v1746 = vpow.pop %v1745
        %v1747 = vmul.f32 %v1741, 1.442695
        %v1748 = vpow.pop %v1747
        %v1749 = vmul.f32 %v1742, 1.442695
        %v1750 = vpow.pop %v1749
        %v1751 = vsel %vm1542, %v1744, 0.0
        %1752 = vadd.xlane.f32.xlu0 %v1751
        %v1753 = vpop.xlane.xlu0 %1752
        %v1754 = vsel %vm1542, %v1746, 0.0
        %1755 = vadd.xlane.f32.xlu0 %v1754
        %v1756 = vpop.xlane.xlu0 %1755
        %v1757 = vsel %vm1542, %v1748, 0.0
        %1758 = vadd.xlane.f32.xlu0 %v1757
        %v1759 = vpop.xlane.xlu0 %1758
        %v1760 = vsel %vm1542, %v1750, 0.0
        %1761 = vadd.xlane.f32.xlu0 %v1760
        %v1762 = vpop.xlane.xlu0 %1761
        %v1763 = vrcp.pop %v1753
        %v1764 = vrcp.pop %v1756
        %v1765 = vrcp.pop %v1759
        %v1766 = vrcp.pop %v1762
        %v1767 = vmul.f32 %v1744, %v1763
        %v1768 = vmul.f32 %v1746, %v1764
        %v1769 = vmul.f32 %v1748, %v1765
        %v1770 = vmul.f32 %v1750, %v1766
        %v1771 = vpack.c.bf16 %v1767, %v1767
        %v1772 = vpack.c.bf16 %v1768, %v1768
        %v1773 = vpack.c.bf16 %v1769, %v1769
        %v1774 = vpack.c.bf16 %v1770, %v1770
        %v1775 = vpack.c.bf16 %v1373, %v1373
        %v1776 = vpack.c.bf16 %v1425, %v1425
        %v1777 = vpack.c.bf16 %v1477, %v1477
        %v1778 = vpack.c.bf16 %v1529, %v1529
        %v1780 = vsel %vm1542, %v1771, 0
        %vm1782 = vcmask 1043456
        %v1784 = vsel %vm1782, %v1775, 0
        %1786 = vmatprep.subr.bf16.mxu0 0
        %1787 = vmatpush1.bf16.msra.mxu0 0
        %1788 = vmatprep.subr.bf16.mxu0 0
        %1789 = vmatpush1.bf16.msra.mxu0 0
        %1790 = vmatprep.subr.bf16.mxu0 0
        %1791 = vmatpush1.bf16.msra.mxu0 0
        %1792 = vmatprep.subr.bf16.mxu0 0
        %1793 = vmatpush1.bf16.msra.mxu0 0
        %1794 = vmatprep.subr.bf16.mxu0 0
        %1795 = vmatpush1.bf16.msra.mxu0 0
        %1796 = vmatprep.subr.bf16.mxu0 0
        %1797 = vmatpush1.bf16.msra.mxu0 0
        %1798 = vmatprep.subr.bf16.mxu0 0
        %1799 = vmatpush1.bf16.msra.mxu0 0
        %1800 = vmatprep.subr.bf16.mxu0 0
        %1801 = vmatpush1.bf16.msra.mxu0 %v1784
        %1802 = vmatprep.subr.bf16.mxu0 0
        %1803 = vmatpush2.bf16.msra.mxu0 0
        %1804 = vmatprep.subr.bf16.mxu0 0
        %1805 = vmatpush2.bf16.msra.mxu0 0
        %1806 = vmatprep.subr.bf16.mxu0 0
        %1807 = vmatpush2.bf16.msra.mxu0 0
        %1808 = vmatprep.subr.bf16.mxu0 0
        %1809 = vmatpush2.bf16.msra.mxu0 0
        %1810 = vmatprep.subr.bf16.mxu0 0
        %1811 = vmatpush2.bf16.msra.mxu0 0
        %1812 = vmatprep.subr.bf16.mxu0 0
        %1813 = vmatpush2.bf16.msra.mxu0 0
        %1814 = vmatprep.subr.bf16.mxu0 0
        %1815 = vmatpush2.bf16.msra.mxu0 0
        %1816 = vmatprep.subr.bf16.mxu0 0
        %1817 = vmatpush2.bf16.msra.mxu0 0
        %1818 = vmatprep.mubr.bf16.mxu0 0
        %1819 = vmatmul.mubr.bf16.gmra.mxu0 %v1780
        %v1820 = vpop.f32.mrf.mxu0
        %v1821 = vadd.f32 0.0, %v1820
        %v1822 = vpop.f32.mrf.mxu0
        %v1823 = vpop.f32.mrf.mxu0
        %v1824 = vpop.f32.mrf.mxu0
        %1825 = vdwg.mxu0
        %v1827 = vsel %vm1542, %v1772, 0
        %v1830 = vsel %vm1782, %v1776, 0
        %1832 = vmatprep.subr.bf16.mxu0 0
        %1833 = vmatpush1.bf16.msra.mxu0 0
        %1834 = vmatprep.subr.bf16.mxu0 0
        %1835 = vmatpush1.bf16.msra.mxu0 0
        %1836 = vmatprep.subr.bf16.mxu0 0
        %1837 = vmatpush1.bf16.msra.mxu0 0
        %1838 = vmatprep.subr.bf16.mxu0 0
        %1839 = vmatpush1.bf16.msra.mxu0 0
        %1840 = vmatprep.subr.bf16.mxu0 0
        %1841 = vmatpush1.bf16.msra.mxu0 0
        %1842 = vmatprep.subr.bf16.mxu0 0
        %1843 = vmatpush1.bf16.msra.mxu0 0
        %1844 = vmatprep.subr.bf16.mxu0 0
        %1845 = vmatpush1.bf16.msra.mxu0 0
        %1846 = vmatprep.subr.bf16.mxu0 0
        %1847 = vmatpush1.bf16.msra.mxu0 %v1830
        %1848 = vmatprep.subr.bf16.mxu0 0
        %1849 = vmatpush2.bf16.msra.mxu0 0
        %1850 = vmatprep.subr.bf16.mxu0 0
        %1851 = vmatpush2.bf16.msra.mxu0 0
        %1852 = vmatprep.subr.bf16.mxu0 0
        %1853 = vmatpush2.bf16.msra.mxu0 0
        %1854 = vmatprep.subr.bf16.mxu0 0
        %1855 = vmatpush2.bf16.msra.mxu0 0
        %1856 = vmatprep.subr.bf16.mxu0 0
        %1857 = vmatpush2.bf16.msra.mxu0 0
        %1858 = vmatprep.subr.bf16.mxu0 0
        %1859 = vmatpush2.bf16.msra.mxu0 0
        %1860 = vmatprep.subr.bf16.mxu0 0
        %1861 = vmatpush2.bf16.msra.mxu0 0
        %1862 = vmatprep.subr.bf16.mxu0 0
        %1863 = vmatpush2.bf16.msra.mxu0 0
        %1864 = vmatprep.mubr.bf16.mxu0 0
        %1865 = vmatmul.mubr.bf16.gmra.mxu0 %v1827
        %v1866 = vpop.f32.mrf.mxu0
        %v1867 = vadd.f32 0.0, %v1866
        %v1868 = vpop.f32.mrf.mxu0
        %v1869 = vpop.f32.mrf.mxu0
        %v1870 = vpop.f32.mrf.mxu0
        %1871 = vdwg.mxu0
        %v1873 = vsel %vm1542, %v1773, 0
        %v1876 = vsel %vm1782, %v1777, 0
        %1878 = vmatprep.subr.bf16.mxu0 0
        %1879 = vmatpush1.bf16.msra.mxu0 0
        %1880 = vmatprep.subr.bf16.mxu0 0
        %1881 = vmatpush1.bf16.msra.mxu0 0
        %1882 = vmatprep.subr.bf16.mxu0 0
        %1883 = vmatpush1.bf16.msra.mxu0 0
        %1884 = vmatprep.subr.bf16.mxu0 0
        %1885 = vmatpush1.bf16.msra.mxu0 0
        %1886 = vmatprep.subr.bf16.mxu0 0
        %1887 = vmatpush1.bf16.msra.mxu0 0
        %1888 = vmatprep.subr.bf16.mxu0 0
        %1889 = vmatpush1.bf16.msra.mxu0 0
        %1890 = vmatprep.subr.bf16.mxu0 0
        %1891 = vmatpush1.bf16.msra.mxu0 0
        %1892 = vmatprep.subr.bf16.mxu0 0
        %1893 = vmatpush1.bf16.msra.mxu0 %v1876
        %1894 = vmatprep.subr.bf16.mxu0 0
        %1895 = vmatpush2.bf16.msra.mxu0 0
        %1896 = vmatprep.subr.bf16.mxu0 0
        %1897 = vmatpush2.bf16.msra.mxu0 0
        %1898 = vmatprep.subr.bf16.mxu0 0
        %1899 = vmatpush2.bf16.msra.mxu0 0
        %1900 = vmatprep.subr.bf16.mxu0 0
        %1901 = vmatpush2.bf16.msra.mxu0 0
        %1902 = vmatprep.subr.bf16.mxu0 0
        %1903 = vmatpush2.bf16.msra.mxu0 0
        %1904 = vmatprep.subr.bf16.mxu0 0
        %1905 = vmatpush2.bf16.msra.mxu0 0
        %1906 = vmatprep.subr.bf16.mxu0 0
        %1907 = vmatpush2.bf16.msra.mxu0 0
        %1908 = vmatprep.subr.bf16.mxu0 0
        %1909 = vmatpush2.bf16.msra.mxu0 0
        %1910 = vmatprep.mubr.bf16.mxu0 0
        %1911 = vmatmul.mubr.bf16.gmra.mxu0 %v1873
        %v1912 = vpop.f32.mrf.mxu0
        %v1913 = vadd.f32 0.0, %v1912
        %v1914 = vpop.f32.mrf.mxu0
        %v1915 = vpop.f32.mrf.mxu0
        %v1916 = vpop.f32.mrf.mxu0
        %1917 = vdwg.mxu0
        %v1919 = vsel %vm1542, %v1774, 0
        %v1922 = vsel %vm1782, %v1778, 0
        %1924 = vmatprep.subr.bf16.mxu0 0
        %1925 = vmatpush1.bf16.msra.mxu0 0
        %1926 = vmatprep.subr.bf16.mxu0 0
        %1927 = vmatpush1.bf16.msra.mxu0 0
        %1928 = vmatprep.subr.bf16.mxu0 0
        %1929 = vmatpush1.bf16.msra.mxu0 0
        %1930 = vmatprep.subr.bf16.mxu0 0
        %1931 = vmatpush1.bf16.msra.mxu0 0
        %1932 = vmatprep.subr.bf16.mxu0 0
        %1933 = vmatpush1.bf16.msra.mxu0 0
        %1934 = vmatprep.subr.bf16.mxu0 0
        %1935 = vmatpush1.bf16.msra.mxu0 0
        %1936 = vmatprep.subr.bf16.mxu0 0
        %1937 = vmatpush1.bf16.msra.mxu0 0
        %1938 = vmatprep.subr.bf16.mxu0 0
        %1939 = vmatpush1.bf16.msra.mxu0 %v1922
        %1940 = vmatprep.subr.bf16.mxu0 0
        %1941 = vmatpush2.bf16.msra.mxu0 0
        %1942 = vmatprep.subr.bf16.mxu0 0
        %1943 = vmatpush2.bf16.msra.mxu0 0
        %1944 = vmatprep.subr.bf16.mxu0 0
        %1945 = vmatpush2.bf16.msra.mxu0 0
        %1946 = vmatprep.subr.bf16.mxu0 0
        %1947 = vmatpush2.bf16.msra.mxu0 0
        %1948 = vmatprep.subr.bf16.mxu0 0
        %1949 = vmatpush2.bf16.msra.mxu0 0
        %1950 = vmatprep.subr.bf16.mxu0 0
        %1951 = vmatpush2.bf16.msra.mxu0 0
        %1952 = vmatprep.subr.bf16.mxu0 0
        %1953 = vmatpush2.bf16.msra.mxu0 0
        %1954 = vmatprep.subr.bf16.mxu0 0
        %1955 = vmatpush2.bf16.msra.mxu0 0
        %1956 = vmatprep.mubr.bf16.mxu0 0
        %1957 = vmatmul.mubr.bf16.gmra.mxu0 %v1919
        %v1958 = vpop.f32.mrf.mxu0
        %v1959 = vadd.f32 0.0, %v1958
        %v1960 = vpop.f32.mrf.mxu0
        %v1961 = vpop.f32.mrf.mxu0
        %v1962 = vpop.f32.mrf.mxu0
        %1963 = vdwg.mxu0
        %v1964 = vpack.c.bf16 %v1821, %v1821
        %v1965 = vpack.c.bf16 %v1867, %v1867
        %v1966 = vpack.c.bf16 %v1913, %v1913
        %v1967 = vpack.c.bf16 %v1959, %v1959
        %v1968 = vld [vmem:[%s10] sm:$0xf]
        %v1969 = vld [vmem:[%s10 + $0x4] sm:$0xf]
        %v1970 = vld [vmem:[%s10 + $0x8] sm:$0xf]
        %v1971 = vld [vmem:[%s10 + $0xc] sm:$0xf]
        %v1973 = vsel %vm1542, %v1964, 0
        %v1976 = vsel %vm1782, %v1968, 0
        %1978 = vmatprep.subr.bf16.mxu0 0
        %1979 = vmatpush1.bf16.msra.mxu0 0
        %1980 = vmatprep.subr.bf16.mxu0 0
        %1981 = vmatpush1.bf16.msra.mxu0 0
        %1982 = vmatprep.subr.bf16.mxu0 0
        %1983 = vmatpush1.bf16.msra.mxu0 0
        %1984 = vmatprep.subr.bf16.mxu0 0
        %1985 = vmatpush1.bf16.msra.mxu0 0
        %1986 = vmatprep.subr.bf16.mxu0 0
        %1987 = vmatpush1.bf16.msra.mxu0 0
        %1988 = vmatprep.subr.bf16.mxu0 0
        %1989 = vmatpush1.bf16.msra.mxu0 0
        %1990 = vmatprep.subr.bf16.mxu0 0
        %1991 = vmatpush1.bf16.msra.mxu0 0
        %1992 = vmatprep.subr.bf16.mxu0 0
        %1993 = vmatpush1.bf16.msra.mxu0 %v1976
        %1994 = vmatprep.subr.bf16.mxu0 0
        %1995 = vmatpush2.bf16.msra.mxu0 0
        %1996 = vmatprep.subr.bf16.mxu0 0
        %1997 = vmatpush2.bf16.msra.mxu0 0
        %1998 = vmatprep.subr.bf16.mxu0 0
        %1999 = vmatpush2.bf16.msra.mxu0 0
        %2000 = vmatprep.subr.bf16.mxu0 0
        %2001 = vmatpush2.bf16.msra.mxu0 0
        %2002 = vmatprep.subr.bf16.mxu0 0
        %2003 = vmatpush2.bf16.msra.mxu0 0
        %2004 = vmatprep.subr.bf16.mxu0 0
        %2005 = vmatpush2.bf16.msra.mxu0 0
        %2006 = vmatprep.subr.bf16.mxu0 0
        %2007 = vmatpush2.bf16.msra.mxu0 0
        %2008 = vmatprep.subr.bf16.mxu0 0
        %2009 = vmatpush2.bf16.msra.mxu0 0
        %2010 = vmatprep.mubr.bf16.mxu0 0
        %2011 = vmatmul.mubr.bf16.gmra.mxu0 %v1973
        %v2012 = vpop.f32.mrf.mxu0
        %v2013 = vadd.f32 0.0, %v2012
        %v2014 = vpop.f32.mrf.mxu0
        %v2015 = vpop.f32.mrf.mxu0
        %v2016 = vpop.f32.mrf.mxu0
        %2017 = vdwg.mxu0
        %v2019 = vsel %vm1542, %v1965, 0
        %v2022 = vsel %vm1782, %v1969, 0
        %2024 = vmatprep.subr.bf16.mxu0 0
        %2025 = vmatpush1.bf16.msra.mxu0 0
        %2026 = vmatprep.subr.bf16.mxu0 0
        %2027 = vmatpush1.bf16.msra.mxu0 0
        %2028 = vmatprep.subr.bf16.mxu0 0
        %2029 = vmatpush1.bf16.msra.mxu0 0
        %2030 = vmatprep.subr.bf16.mxu0 0
        %2031 = vmatpush1.bf16.msra.mxu0 0
        %2032 = vmatprep.subr.bf16.mxu0 0
        %2033 = vmatpush1.bf16.msra.mxu0 0
        %2034 = vmatprep.subr.bf16.mxu0 0
        %2035 = vmatpush1.bf16.msra.mxu0 0
        %2036 = vmatprep.subr.bf16.mxu0 0
        %2037 = vmatpush1.bf16.msra.mxu0 0
        %2038 = vmatprep.subr.bf16.mxu0 0
        %2039 = vmatpush1.bf16.msra.mxu0 %v2022
        %2040 = vmatprep.subr.bf16.mxu0 0
        %2041 = vmatpush2.bf16.msra.mxu0 0
        %2042 = vmatprep.subr.bf16.mxu0 0
        %2043 = vmatpush2.bf16.msra.mxu0 0
        %2044 = vmatprep.subr.bf16.mxu0 0
        %2045 = vmatpush2.bf16.msra.mxu0 0
        %2046 = vmatprep.subr.bf16.mxu0 0
        %2047 = vmatpush2.bf16.msra.mxu0 0
        %2048 = vmatprep.subr.bf16.mxu0 0
        %2049 = vmatpush2.bf16.msra.mxu0 0
        %2050 = vmatprep.subr.bf16.mxu0 0
        %2051 = vmatpush2.bf16.msra.mxu0 0
        %2052 = vmatprep.subr.bf16.mxu0 0
        %2053 = vmatpush2.bf16.msra.mxu0 0
        %2054 = vmatprep.subr.bf16.mxu0 0
        %2055 = vmatpush2.bf16.msra.mxu0 0
        %2056 = vmatprep.mubr.bf16.mxu0 0
        %2057 = vmatmul.mubr.bf16.gmra.mxu0 %v2019
        %v2058 = vpop.f32.mrf.mxu0
        %v2059 = vadd.f32 0.0, %v2058
        %v2060 = vpop.f32.mrf.mxu0
        %v2061 = vpop.f32.mrf.mxu0
        %v2062 = vpop.f32.mrf.mxu0
        %2063 = vdwg.mxu0
        %v2065 = vsel %vm1542, %v1966, 0
        %v2068 = vsel %vm1782, %v1970, 0
        %2070 = vmatprep.subr.bf16.mxu0 0
        %2071 = vmatpush1.bf16.msra.mxu0 0
        %2072 = vmatprep.subr.bf16.mxu0 0
        %2073 = vmatpush1.bf16.msra.mxu0 0
        %2074 = vmatprep.subr.bf16.mxu0 0
        %2075 = vmatpush1.bf16.msra.mxu0 0
        %2076 = vmatprep.subr.bf16.mxu0 0
        %2077 = vmatpush1.bf16.msra.mxu0 0
        %2078 = vmatprep.subr.bf16.mxu0 0
        %2079 = vmatpush1.bf16.msra.mxu0 0
        %2080 = vmatprep.subr.bf16.mxu0 0
        %2081 = vmatpush1.bf16.msra.mxu0 0
        %2082 = vmatprep.subr.bf16.mxu0 0
        %2083 = vmatpush1.bf16.msra.mxu0 0
        %2084 = vmatprep.subr.bf16.mxu0 0
        %2085 = vmatpush1.bf16.msra.mxu0 %v2068
        %2086 = vmatprep.subr.bf16.mxu0 0
        %2087 = vmatpush2.bf16.msra.mxu0 0
        %2088 = vmatprep.subr.bf16.mxu0 0
        %2089 = vmatpush2.bf16.msra.mxu0 0
        %2090 = vmatprep.subr.bf16.mxu0 0
        %2091 = vmatpush2.bf16.msra.mxu0 0
        %2092 = vmatprep.subr.bf16.mxu0 0
        %2093 = vmatpush2.bf16.msra.mxu0 0
        %2094 = vmatprep.subr.bf16.mxu0 0
        %2095 = vmatpush2.bf16.msra.mxu0 0
        %2096 = vmatprep.subr.bf16.mxu0 0
        %2097 = vmatpush2.bf16.msra.mxu0 0
        %2098 = vmatprep.subr.bf16.mxu0 0
        %2099 = vmatpush2.bf16.msra.mxu0 0
        %2100 = vmatprep.subr.bf16.mxu0 0
        %2101 = vmatpush2.bf16.msra.mxu0 0
        %2102 = vmatprep.mubr.bf16.mxu0 0
        %2103 = vmatmul.mubr.bf16.gmra.mxu0 %v2065
        %v2104 = vpop.f32.mrf.mxu0
        %v2105 = vadd.f32 0.0, %v2104
        %v2106 = vpop.f32.mrf.mxu0
        %v2107 = vpop.f32.mrf.mxu0
        %v2108 = vpop.f32.mrf.mxu0
        %2109 = vdwg.mxu0
        %v2111 = vsel %vm1542, %v1967, 0
        %v2114 = vsel %vm1782, %v1971, 0
        %2116 = vmatprep.subr.bf16.mxu0 0
        %2117 = vmatpush1.bf16.msra.mxu0 0
        %2118 = vmatprep.subr.bf16.mxu0 0
        %2119 = vmatpush1.bf16.msra.mxu0 0
        %2120 = vmatprep.subr.bf16.mxu0 0
        %2121 = vmatpush1.bf16.msra.mxu0 0
        %2122 = vmatprep.subr.bf16.mxu0 0
        %2123 = vmatpush1.bf16.msra.mxu0 0
        %2124 = vmatprep.subr.bf16.mxu0 0
        %2125 = vmatpush1.bf16.msra.mxu0 0
        %2126 = vmatprep.subr.bf16.mxu0 0
        %2127 = vmatpush1.bf16.msra.mxu0 0
        %2128 = vmatprep.subr.bf16.mxu0 0
        %2129 = vmatpush1.bf16.msra.mxu0 0
        %2130 = vmatprep.subr.bf16.mxu0 0
        %2131 = vmatpush1.bf16.msra.mxu0 %v2114
        %2132 = vmatprep.subr.bf16.mxu0 0
        %2133 = vmatpush2.bf16.msra.mxu0 0
        %2134 = vmatprep.subr.bf16.mxu0 0
        %2135 = vmatpush2.bf16.msra.mxu0 0
        %2136 = vmatprep.subr.bf16.mxu0 0
        %2137 = vmatpush2.bf16.msra.mxu0 0
        %2138 = vmatprep.subr.bf16.mxu0 0
        %2139 = vmatpush2.bf16.msra.mxu0 0
        %2140 = vmatprep.subr.bf16.mxu0 0
        %2141 = vmatpush2.bf16.msra.mxu0 0
        %2142 = vmatprep.subr.bf16.mxu0 0
        %2143 = vmatpush2.bf16.msra.mxu0 0
        %2144 = vmatprep.subr.bf16.mxu0 0
        %2145 = vmatpush2.bf16.msra.mxu0 0
        %2146 = vmatprep.subr.bf16.mxu0 0
        %2147 = vmatpush2.bf16.msra.mxu0 0
        %2148 = vmatprep.mubr.bf16.mxu0 0
        %2149 = vmatmul.mubr.bf16.gmra.mxu0 %v2111
        %v2150 = vpop.f32.mrf.mxu0
        %v2151 = vadd.f32 0.0, %v2150
        %v2152 = vpop.f32.mrf.mxu0
        %v2153 = vpop.f32.mrf.mxu0
        %v2154 = vpop.f32.mrf.mxu0
        %2155 = vdwg.mxu0
        %v2156 = vsel %vm724, %v2013, 0.0
        %v2157 = vsel %vm724, %v2059, 0.0
        %v2158 = vadd.f32 %v2156, %v2157
        %v2159 = vsel %vm724, %v2105, 0.0
        %v2160 = vadd.f32 %v2158, %v2159
        %v2161 = vsel %vm724, %v2151, 0.0
        %v2162 = vadd.f32 %v2160, %v2161
        %v2163 = vld [vmem:[%s11] sm:$0x1]
        %v2165 = vlaneseq
        %v2166 = vshrl.u32 %v2165, 7
        %v2167 = vsub.s32 0, %v2166
        %v2168 = vrot.slane %v2163, %v2167
        %v2170 = vadd.f32 %v2162, %v2168
        %v2171 = vsel %vm724, %v2170, 0.0
        %2172 = vadd.xlane.f32.xlu0 %v2171
        %v2173 = vpop.xlane.xlu0 %2172
        %v2174 = vmul.f32 %v2173, %v728
        %v2175 = vsub.f32 %v2170, %v2174
        %v2176 = vmul.f32 %v2175, %v2175
        %v2177 = vsel %vm724, %v2176, 0.0
        %2178 = vadd.xlane.f32.xlu0 %v2177
        %v2179 = vpop.xlane.xlu0 %2178
        %v2180 = vmul.f32 %v2179, %v728
        %v2181 = vadd.f32 %v2180, 1e-05
        %v2182 = vrsqrt.pop %v2181
        %v2183 = vmul.f32 %v2175, %v2182
        %v2184 = vld [vmem:[%s12] sm:$0x1]
        %v2186 = vlaneseq
        %v2187 = vshrl.u32 %v2186, 7
        %v2188 = vsub.s32 0, %v2187
        %v2189 = vrot.slane %v2184, %v2188
        %v2191 = vmul.f32 %v2183, %v2189
        %v2192 = vld [vmem:[%s13] sm:$0x1]
        %v2194 = vlaneseq
        %v2195 = vshrl.u32 %v2194, 7
        %v2196 = vsub.s32 0, %v2195
        %v2197 = vrot.slane %v2192, %v2196
        %v2199 = vadd.f32 %v2191, %v2197
        %v2200 = vadd.f32 %v722, %v2199
        %v2201 = vsel %vm724, %v2200, 0.0
        %2202 = vadd.xlane.f32.xlu0 %v2201
        %v2203 = vpop.xlane.xlu0 %2202
        %v2204 = vmul.f32 %v2203, %v728
        %v2205 = vsub.f32 %v2200, %v2204
        %v2206 = vmul.f32 %v2205, %v2205
        %v2207 = vsel %vm724, %v2206, 0.0
        %2208 = vadd.xlane.f32.xlu0 %v2207
        %v2209 = vpop.xlane.xlu0 %2208
        %v2210 = vmul.f32 %v2209, %v728
        %v2211 = vadd.f32 %v2210, 1e-05
        %v2212 = vrsqrt.pop %v2211
        %v2213 = vmul.f32 %v2205, %v2212
        %v2214 = vld [vmem:[%s14] sm:$0x1]
        %v2216 = vlaneseq
        %v2217 = vshrl.u32 %v2216, 7
        %v2218 = vsub.s32 0, %v2217
        %v2219 = vrot.slane %v2214, %v2218
        %v2221 = vmul.f32 %v2213, %v2219
        %v2222 = vld [vmem:[%s15] sm:$0x1]
        %v2224 = vlaneseq
        %v2225 = vshrl.u32 %v2224, 7
        %v2226 = vsub.s32 0, %v2225
        %v2227 = vrot.slane %v2222, %v2226
        %v2229 = vadd.f32 %v2221, %v2227
        %v2230 = vpack.c.bf16 %v2229, %v2229
        %v2231 = vld [vmem:[%s16] sm:$0xf]
        %v2232 = vld [vmem:[%s16 + $0x4] sm:$0xf]
        %v2233 = vld [vmem:[%s16 + $0x8] sm:$0xf]
        %v2234 = vld [vmem:[%s16 + $0xc] sm:$0xf]
        %v2235 = vld [vmem:[%s17] sm:$0x1]
        %v2237 = vlaneseq
        %v2238 = vshrl.u32 %v2237, 7
        %v2239 = vsub.s32 0, %v2238
        %v2240 = vrot.slane %v2235, %v2239
        %v2246 = vunpack.c.l.b16 %v2231
        %v2247 = vunpack.c.l.b16 %v2232
        %v2248 = vunpack.c.l.b16 %v2233
        %v2249 = vunpack.c.l.b16 %v2234
        %v2250 = vpack.c.b16 %v2247, %v2246
        %v2251 = vpack.c.b16 %v2249, %v2248
        %v2255 = vsel %vm724, %v2230, 0
        %2257 = vmatprep.subr.bf16.mxu0 0
        %2258 = vmatpush1.bf16.msra.mxu0 0
        %2259 = vmatprep.subr.bf16.mxu0 0
        %2260 = vmatpush1.bf16.msra.mxu0 0
        %2261 = vmatprep.subr.bf16.mxu0 0
        %2262 = vmatpush1.bf16.msra.mxu0 0
        %2263 = vmatprep.subr.bf16.mxu0 0
        %2264 = vmatpush1.bf16.msra.mxu0 0
        %2265 = vmatprep.subr.bf16.mxu0 0
        %2266 = vmatpush1.bf16.msra.mxu0 0
        %2267 = vmatprep.subr.bf16.mxu0 0
        %2268 = vmatpush1.bf16.msra.mxu0 0
        %2269 = vmatprep.subr.bf16.mxu0 0
        %2270 = vmatpush1.bf16.msra.mxu0 %v2251
        %2271 = vmatprep.subr.bf16.mxu0 0
        %2272 = vmatpush1.bf16.msra.mxu0 %v2250
        %2273 = vmatprep.subr.bf16.mxu0 0
        %2274 = vmatpush2.bf16.msra.mxu0 0
        %2275 = vmatprep.subr.bf16.mxu0 0
        %2276 = vmatpush2.bf16.msra.mxu0 0
        %2277 = vmatprep.subr.bf16.mxu0 0
        %2278 = vmatpush2.bf16.msra.mxu0 0
        %2279 = vmatprep.subr.bf16.mxu0 0
        %2280 = vmatpush2.bf16.msra.mxu0 0
        %2281 = vmatprep.subr.bf16.mxu0 0
        %2282 = vmatpush2.bf16.msra.mxu0 0
        %2283 = vmatprep.subr.bf16.mxu0 0
        %2284 = vmatpush2.bf16.msra.mxu0 0
        %2285 = vmatprep.subr.bf16.mxu0 0
        %2286 = vmatpush2.bf16.msra.mxu0 0
        %2287 = vmatprep.subr.bf16.mxu0 0
        %2288 = vmatpush2.bf16.msra.mxu0 0
        %2289 = vmatprep.mubr.bf16.mxu0 0
        %2290 = vmatmul.mubr.bf16.gmra.mxu0 %v2255
        %v2291 = vpop.f32.mrf.mxu0
        %v2292 = vadd.f32 %v2240, %v2291
        %v2293 = vpop.f32.mrf.mxu0
        %v2294 = vpop.f32.mrf.mxu0
        %v2295 = vpop.f32.mrf.mxu0
        %2296 = vdwg.mxu0
        %v2297 = vmax.f32 %v2292, 0.0
        %v2298 = vpack.c.bf16 %v2297, %v2297
        %v2299 = vld [vmem:[%s18] sm:$0xf]
        %v2300 = vld [vmem:[%s18 + $0x4] sm:$0xf]
        %v2301 = vld [vmem:[%s18 + $0x8] sm:$0xf]
        %v2302 = vld [vmem:[%s18 + $0xc] sm:$0xf]
        %v2303 = vld [vmem:[%s18 + $0x10] sm:$0xf]
        %v2304 = vld [vmem:[%s18 + $0x14] sm:$0xf]
        %v2305 = vld [vmem:[%s18 + $0x18] sm:$0xf]
        %v2306 = vld [vmem:[%s18 + $0x1c] sm:$0xf]
        %v2307 = vld [vmem:[%s18 + $0x20] sm:$0xf]
        %v2308 = vld [vmem:[%s18 + $0x24] sm:$0xf]
        %v2309 = vld [vmem:[%s18 + $0x28] sm:$0xf]
        %v2310 = vld [vmem:[%s18 + $0x2c] sm:$0xf]
        %v2311 = vld [vmem:[%s18 + $0x30] sm:$0xf]
        %v2312 = vld [vmem:[%s18 + $0x34] sm:$0xf]
        %v2313 = vld [vmem:[%s18 + $0x38] sm:$0xf]
        %v2314 = vld [vmem:[%s18 + $0x3c] sm:$0xf]
        %v2315 = vld [vmem:[%s19] sm:$0x1]
        %v2317 = vlaneseq
        %v2318 = vshrl.u32 %v2317, 7
        %v2319 = vsub.s32 0, %v2318
        %v2320 = vrot.slane %v2315, %v2319
        %v2338 = vunpack.c.l.b16 %v2299
        %v2339 = vunpack.c.l.b16 %v2300
        %v2340 = vunpack.c.l.b16 %v2301
        %v2341 = vunpack.c.l.b16 %v2302
        %v2342 = vunpack.c.l.b16 %v2303
        %v2343 = vunpack.c.l.b16 %v2304
        %v2344 = vunpack.c.l.b16 %v2305
        %v2345 = vunpack.c.l.b16 %v2306
        %v2346 = vunpack.c.l.b16 %v2307
        %v2347 = vunpack.c.l.b16 %v2308
        %v2348 = vunpack.c.l.b16 %v2309
        %v2349 = vunpack.c.l.b16 %v2310
        %v2350 = vunpack.c.l.b16 %v2311
        %v2351 = vunpack.c.l.b16 %v2312
        %v2352 = vunpack.c.l.b16 %v2313
        %v2353 = vunpack.c.l.b16 %v2314
        %v2354 = vpack.c.b16 %v2339, %v2338
        %v2355 = vpack.c.b16 %v2341, %v2340
        %v2356 = vpack.c.b16 %v2343, %v2342
        %v2357 = vpack.c.b16 %v2345, %v2344
        %v2358 = vpack.c.b16 %v2347, %v2346
        %v2359 = vpack.c.b16 %v2349, %v2348
        %v2360 = vpack.c.b16 %v2351, %v2350
        %v2361 = vpack.c.b16 %v2353, %v2352
        %2370 = vmatprep.subr.bf16.mxu0 0
        %2371 = vmatpush1.bf16.msra.mxu0 %v2361
        %2372 = vmatprep.subr.bf16.mxu0 0
        %2373 = vmatpush1.bf16.msra.mxu0 %v2360
        %2374 = vmatprep.subr.bf16.mxu0 0
        %2375 = vmatpush1.bf16.msra.mxu0 %v2359
        %2376 = vmatprep.subr.bf16.mxu0 0
        %2377 = vmatpush1.bf16.msra.mxu0 %v2358
        %2378 = vmatprep.subr.bf16.mxu0 0
        %2379 = vmatpush1.bf16.msra.mxu0 %v2357
        %2380 = vmatprep.subr.bf16.mxu0 0
        %2381 = vmatpush1.bf16.msra.mxu0 %v2356
        %2382 = vmatprep.subr.bf16.mxu0 0
        %2383 = vmatpush1.bf16.msra.mxu0 %v2355
        %2384 = vmatprep.subr.bf16.mxu0 0
        %2385 = vmatpush1.bf16.msra.mxu0 %v2354
        %2386 = vmatprep.subr.bf16.mxu0 0
        %2387 = vmatpush2.bf16.msra.mxu0 0
        %2388 = vmatprep.subr.bf16.mxu0 0
        %2389 = vmatpush2.bf16.msra.mxu0 0
        %2390 = vmatprep.subr.bf16.mxu0 0
        %2391 = vmatpush2.bf16.msra.mxu0 0
        %2392 = vmatprep.subr.bf16.mxu0 0
        %2393 = vmatpush2.bf16.msra.mxu0 0
        %2394 = vmatprep.subr.bf16.mxu0 0
        %2395 = vmatpush2.bf16.msra.mxu0 0
        %2396 = vmatprep.subr.bf16.mxu0 0
        %2397 = vmatpush2.bf16.msra.mxu0 0
        %2398 = vmatprep.subr.bf16.mxu0 0
        %2399 = vmatpush2.bf16.msra.mxu0 0
        %2400 = vmatprep.subr.bf16.mxu0 0
        %2401 = vmatpush2.bf16.msra.mxu0 0
        %2402 = vmatprep.mubr.bf16.mxu0 0
        %2403 = vmatmul.mubr.bf16.gmra.mxu0 %v2298
        %v2404 = vpop.f32.mrf.mxu0
        %v2405 = vadd.f32 %v2320, %v2404
        %v2406 = vpop.f32.mrf.mxu0
        %v2407 = vpop.f32.mrf.mxu0
        %v2408 = vpop.f32.mrf.mxu0
        %2409 = vdwg.mxu0
        %v2410 = vsel %vm724, %v2405, 0.0
        %2411 = vadd.xlane.f32.xlu0 %v2410
        %v2412 = vpop.xlane.xlu0 %2411
        %v2413 = vmul.f32 %v2412, %v728
        %v2414 = vsub.f32 %v2405, %v2413
        %v2415 = vmul.f32 %v2414, %v2414
        %v2416 = vsel %vm724, %v2415, 0.0
        %2417 = vadd.xlane.f32.xlu0 %v2416
        %v2418 = vpop.xlane.xlu0 %2417
        %v2419 = vmul.f32 %v2418, %v728
        %v2420 = vadd.f32 %v2419, 1e-05
        %v2421 = vrsqrt.pop %v2420
        %v2422 = vmul.f32 %v2414, %v2421
        %v2423 = vld [vmem:[%s20] sm:$0x1]
        %v2425 = vlaneseq
        %v2426 = vshrl.u32 %v2425, 7
        %v2427 = vsub.s32 0, %v2426
        %v2428 = vrot.slane %v2423, %v2427
        %v2430 = vmul.f32 %v2422, %v2428
        %v2431 = vld [vmem:[%s21] sm:$0x1]
        %v2433 = vlaneseq
        %v2434 = vshrl.u32 %v2433, 7
        %v2435 = vsub.s32 0, %v2434
        %v2436 = vrot.slane %v2431, %v2435
        %v2438 = vadd.f32 %v2430, %v2436
        %v2439 = vadd.f32 %v2200, %v2438
        %2440 = vst.msk [vmem:[%s709] sm:$0xff] %vm724, %v2439
        %s2441 = sand.u32 %s532, 1
        %s2442 = scalar_lea.sflag [#allocation3], %s2441
        %s2443 = sand.u32 %s532, 1
        %s2444 = smul.addr %s2443, 8
        %s2445 = scalar_lea.vmem [#allocation2], %s2444
        // Predicated region
        $region109: #{tpu_custom_call.1} parent=107 // pred_check
          %p2446 = pneg %p542
        $region110: #{tpu_custom_call.1} parent=107 // pred_check_branch
          %2448 = sbr.rel (%p2446) target = $region112
        $region111: #{tpu_custom_call.1} parent=107 // pred_region
          %s2450 = ssub.s32 128, 128
          %2451 = vsyncadd %s2442, %s2450
          %s2452 = sadd.s32 %s41, %s40
          %s2453 = smul.addr %s2452, 128
          %s2454 = scalar_lea.hbm %s22, %s2453
          %s2456 = sshll.u32 %s2445, 4
          %s2457 = int_to_ptr.vmem [resolvable:$true] %s2456
          %2459 = dma.vmem_to_hbm [thread:$0]  %s2457, 128, %s2454, %s2442
        $region112: #{tpu_custom_call.1} parent=107 // pred_fallthru
          _
      $region108: #{tpu_custom_call.1} parent=5 // pred_fallthru
        _
      %p2460 = scmp.le.s32.totalorder 2, %s31
      // Predicated region
      $region113: #{tpu_custom_call.1} parent=5 // pred_check
        %p2461 = pneg %p2460
      $region114: #{tpu_custom_call.1} parent=5 // pred_check_branch
        %2463 = sbr.rel (%p2461) target = $region116
      $region115: #{tpu_custom_call.1} parent=5 // pred_region
        %s2464 = ssub.s32 %s31, 2
        // Predicated region
        $region117: #{tpu_custom_call.1} parent=115 // pred_check
          %p2465 = pneg %p548
        $region118: #{tpu_custom_call.1} parent=115 // pred_check_branch
          %2467 = sbr.rel (%p2465) target = $region120
        $region119: #{tpu_custom_call.1} parent=115 // pred_region
          %s2468 = sand.u32 %s533, 1
          %s2469 = scalar_lea.sflag [#allocation3], %s2468
          %s2470 = sand.u32 %s533, 1
          %s2471 = smul.addr %s2470, 8
          %s2472 = scalar_lea.vmem [#allocation2], %s2471
          %2473 = dma.done %s2469, 128
        $region120: #{tpu_custom_call.1} parent=115 // pred_fallthru
          _
      $region116: #{tpu_custom_call.1} parent=5 // pred_fallthru
        _
    $region6: #{tpu_custom_call.1} parent=1 // loop_footer
      %s35 = sadd.s32 1, %s31
    $region7: #{tpu_custom_call.1} parent=1 // loop_footer_branch
      %30 = sbr.rel target = $region3
    $region8: #{tpu_custom_call.1} parent=1 // loop_exit
      _
    %2474 = vsyncpa [#allocation3], 1
    %s2475 = scalar_lea.sflag [#allocation3], 1
    %2476 = vsyncpa %s2475, 1

</llo_original>
